<compile_context>
chip_gen: v7x
topology: tpu7x:2x2x1
jax: 0.10.0
libtpu: 0.0.40
codegen_flags: <defaults>
</compile_context>

<pallas_src>
import jax
import jax.numpy as jnp
from jax.experimental import pallas as pl
from jax.experimental.pallas import tpu as pltpu


def _head_kernel(cls_ref, wp_ref, bp_ref, w1_ref, b1_ref, w2_ref, b2_ref,
                 out_ref):
    """Pooler + classifier head + softmax; all tiles resident in VMEM."""
    # Activations are cast to bf16 right before each MXU dot; accumulation and
    # all element-wise math are f32.
    cls_bf = cls_ref[...].astype(jnp.bfloat16)                # (TB, H)

    # BERT pooler: tanh(Linear(hidden -> hidden)) on the [CLS] token.
    pooled = jnp.tanh(
        jnp.dot(cls_bf, wp_ref[...], preferred_element_type=jnp.float32)
        + bp_ref[...])                                        # (TB, H) f32

    # classifier[0..2]: Linear(H, 256) -> ReLU -> Dropout (identity at eval).
    h = jnp.dot(pooled.astype(jnp.bfloat16), w1_ref[...],
                preferred_element_type=jnp.float32)
    h = jnp.maximum(h + b1_ref[...], 0.0)                     # (TB, 256) f32
    # TODO(synk): Dropout(0.1) skipped — inference mode (identity).

    # classifier[3]: Linear(256, num_classes), class dim padded to 128 lanes.
    logits = jnp.dot(h.astype(jnp.bfloat16), w2_ref[...],
                     preferred_element_type=jnp.float32)
    logits = logits + b2_ref[...]                             # (TB, CP) f32
    # padded classes carry a -1e30 bias -> exp underflows to 0 below.

    # softmax over classes (max-stabilized); divide via EUP reciprocal.
    m = jnp.max(logits, axis=-1, keepdims=True)
    e = jnp.exp(logits - m)
    inv = pl.reciprocal(jnp.sum(e, axis=-1, keepdims=True), approx=True)
    out_ref[...] = e * inv


def element_classifier_head(cls_tok, wp, bp, w1, b1, w2, b2, *, block_b=128):
    """Run the Pallas head.  cls_tok: (B, H) float32; weights (in, out)."""
    B, H = cls_tok.shape
    HID = w1.shape[1]
    C = w2.shape[1]
    CP = ((C + 127) // 128) * 128                 # lane-dense padded class dim

    # bf16 weights: halves HBM traffic for the dominant transfers.
    wp_bf = wp.astype(jnp.bfloat16)                           # (H, H)
    w1_bf = w1.astype(jnp.bfloat16)                           # (H, HID)
    w2_pad = jnp.zeros((HID, CP), jnp.bfloat16).at[:, :C].set(
        w2.astype(jnp.bfloat16))                              # (HID, CP)
    # Biases stay f32 (tiny). Padded classes get -1e30 so softmax ignores them.
    bp_f = bp.reshape(1, H).astype(jnp.float32)
    b1_f = b1.reshape(1, HID).astype(jnp.float32)
    b2_pad = jnp.full((1, CP), -1e30, jnp.float32).at[:, :C].set(
        b2.reshape(1, C).astype(jnp.float32))

    # Batch tiling: single fully-resident block for small B; 128-row tiles
    # (parallel grid axis -> megacore sharding + DMA pipelining) for large B.
    if B > block_b:
        tb = block_b
        b_pad = pl.cdiv(B, tb) * tb
        cls_in = (cls_tok if b_pad == B else
                  jnp.zeros((b_pad, H), cls_tok.dtype).at[:B].set(cls_tok))
    else:
        tb, b_pad, cls_in = B, B, cls_tok

    row_spec = lambda shape: pl.BlockSpec(shape, lambda i: (i, 0))
    rep_spec = lambda shape: pl.BlockSpec(shape, lambda i: (0, 0))

    # TODO(synk): K-tiling of the (H, H) pooler matmul only pays off at large
    # batch; at small B the whole weight set is fetched once and stays resident.
    out = pl.pallas_call(
        _head_kernel,
        out_shape=jax.ShapeDtypeStruct((b_pad, CP), jnp.float32),
        grid=(b_pad // tb,),
        in_specs=[
            row_spec((tb, H)),       # cls token tile
            rep_spec((H, H)),        # pooler weight (in, out), bf16
            rep_spec((1, H)),        # pooler bias, f32
            rep_spec((H, HID)),      # classifier fc1 weight, bf16
            rep_spec((1, HID)),      # classifier fc1 bias, f32
            rep_spec((HID, CP)),     # classifier fc2 weight (padded), bf16
            rep_spec((1, CP)),       # classifier fc2 bias (padded), f32
        ],
        out_specs=row_spec((tb, CP)),
        compiler_params=pltpu.CompilerParams(
            dimension_semantics=("parallel",),
            vmem_limit_bytes=16 << 20,
        ),
    )(cls_in, wp_bf, bp_f, w1_bf, b1_f, w2_pad, b2_pad)

    return out[:B, :C]


def _reference(cls_tok, wp, bp, w1, b1, w2, b2):
    pooled = jnp.tanh(cls_tok @ wp + bp)
    h = jnp.maximum(pooled @ w1 + b1, 0.0)
    logits = h @ w2 + b2
    return jax.nn.softmax(logits, axis=-1)


if __name__ == "__main__":
    # Small, deterministic setup consistent with the module:
    #   hidden_size = 768 (codebert-base), classifier hidden = 256, classes = 5
    B, SEQ, H, HID, C = 4, 8, 768, 256, 5

    key = jax.random.PRNGKey(0)
    ks = jax.random.split(key, 8)

    # Synthetic transformer last_hidden_state; the pooler/classifier only use
    # the [CLS] (position 0) token.
    # TODO(synk): pretrained CodeBERT backbone is a checkpoint load — not
    # reproducible in a Pallas kernel; its output is stubbed with random data.
    last_hidden = jax.random.normal(ks[0], (B, SEQ, H), jnp.float32) * 0.5
    cls_tok = last_hidden[:, 0, :]                           # (B, H)

    # Deterministic "weights" (stored as (in, out) — see layout note).
    wp = jax.random.normal(ks[1], (H, H), jnp.float32) * 0.02
    bp = jax.random.normal(ks[2], (1, H), jnp.float32) * 0.02
    w1 = jax.random.normal(ks[3], (H, HID), jnp.float32) * 0.02
    b1 = jax.random.normal(ks[4], (1, HID), jnp.float32) * 0.02
    w2 = jax.random.normal(ks[5], (HID, C), jnp.float32) * 0.02
    b2 = jax.random.normal(ks[6], (1, C), jnp.float32) * 0.02

    probs = element_classifier_head(cls_tok, wp, bp, w1, b1, w2, b2)
    probs = jax.block_until_ready(probs)

    ref = _reference(cls_tok, wp, bp, w1, b1, w2, b2)
    assert probs.shape == (B, C)
    # approx reciprocal + bf16 weights -> loosened tolerances.
    assert jnp.allclose(jnp.sum(probs, axis=-1), 1.0, atol=5e-3)
    assert jnp.allclose(probs, ref, atol=2e-2, rtol=2e-2)
    assert jnp.array_equal(jnp.argmax(probs, axis=-1), jnp.argmax(ref, axis=-1))

    print("KERNEL_OK")
</pallas_src>

<mosaic_0001>
module attributes {stable_mosaic.version = 11 : i64} {
  func.func @_head_kernel(%arg0: i32, %arg1: memref<4x768xf32, #tpu.memory_space<vmem>>, %arg2: memref<768x768xbf16, #tpu.memory_space<vmem>>, %arg3: memref<1x768xf32, #tpu.memory_space<vmem>>, %arg4: memref<768x256xbf16, #tpu.memory_space<vmem>>, %arg5: memref<1x256xf32, #tpu.memory_space<vmem>>, %arg6: memref<256x128xbf16, #tpu.memory_space<vmem>>, %arg7: memref<1x128xf32, #tpu.memory_space<vmem>>, %arg8: memref<4x128xf32, #tpu.memory_space<vmem>>) attributes {dimension_semantics = [#tpu.dimension_semantics<parallel>], iteration_bounds = array<i64: 1>, scalar_prefetch = 0 : i64, scratch_operands = 0 : i64, tpu.core_type = #tpu.core_type<tc>, window_params = [{transform_indices = @transform_0, window_bounds = array<i64: 4, 768>}, {pipeline_mode = #tpu.pipeline_mode<synchronous>, transform_indices = @transform_1, window_bounds = array<i64: 768, 768>}, {pipeline_mode = #tpu.pipeline_mode<synchronous>, transform_indices = @transform_2, window_bounds = array<i64: 1, 768>}, {pipeline_mode = #tpu.pipeline_mode<synchronous>, transform_indices = @transform_3, window_bounds = array<i64: 768, 256>}, {pipeline_mode = #tpu.pipeline_mode<synchronous>, transform_indices = @transform_4, window_bounds = array<i64: 1, 256>}, {pipeline_mode = #tpu.pipeline_mode<synchronous>, transform_indices = @transform_5, window_bounds = array<i64: 256, 128>}, {pipeline_mode = #tpu.pipeline_mode<synchronous>, transform_indices = @transform_6, window_bounds = array<i64: 1, 128>}, {transform_indices = @transform_7, window_bounds = array<i64: 4, 128>}]} {
    %c0 = arith.constant 0 : index
    %c0_0 = arith.constant 0 : index
    %0 = vector.load %arg1[%c0, %c0_0] : memref<4x768xf32, #tpu.memory_space<vmem>>, vector<4x768xf32>
    %1 = arith.truncf %0 : vector<4x768xf32> to vector<4x768xbf16>
    %c0_1 = arith.constant 0 : index
    %c0_2 = arith.constant 0 : index
    %2 = vector.load %arg2[%c0_1, %c0_2] : memref<768x768xbf16, #tpu.memory_space<vmem>>, vector<768x768xbf16>
    %cst = arith.constant dense<0.000000e+00> : vector<4x768xf32>
    %3 = tpu.matmul %1, %2, %cst {dimension_numbers = #tpu.dot_dimension_numbers<[1], [0], [0], [1], [0, 0, 1, 1], [], []>} : vector<4x768xbf16>, vector<768x768xbf16>, vector<4x768xf32> -> vector<4x768xf32>
    %c0_3 = arith.constant 0 : index
    %c0_4 = arith.constant 0 : index
    %4 = vector.load %arg3[%c0_3, %c0_4] : memref<1x768xf32, #tpu.memory_space<vmem>>, vector<1x768xf32>
    %5 = vector.broadcast %4 : vector<1x768xf32> to vector<4x768xf32>
    %6 = arith.addf %3, %5 : vector<4x768xf32>
    %7 = math.tanh %6 : vector<4x768xf32>
    %8 = arith.truncf %7 : vector<4x768xf32> to vector<4x768xbf16>
    %c0_5 = arith.constant 0 : index
    %c0_6 = arith.constant 0 : index
    %9 = vector.load %arg4[%c0_5, %c0_6] : memref<768x256xbf16, #tpu.memory_space<vmem>>, vector<768x256xbf16>
    %cst_7 = arith.constant dense<0.000000e+00> : vector<4x256xf32>
    %10 = tpu.matmul %8, %9, %cst_7 {dimension_numbers = #tpu.dot_dimension_numbers<[1], [0], [0], [1], [0, 0, 1, 1], [], []>} : vector<4x768xbf16>, vector<768x256xbf16>, vector<4x256xf32> -> vector<4x256xf32>
    %c0_8 = arith.constant 0 : index
    %c0_9 = arith.constant 0 : index
    %11 = vector.load %arg5[%c0_8, %c0_9] : memref<1x256xf32, #tpu.memory_space<vmem>>, vector<1x256xf32>
    %12 = vector.broadcast %11 : vector<1x256xf32> to vector<4x256xf32>
    %13 = arith.addf %10, %12 : vector<4x256xf32>
    %cst_10 = arith.constant 0.000000e+00 : f32
    %14 = vector.broadcast %cst_10 : f32 to vector<4x256xf32>
    %15 = arith.maximumf %13, %14 : vector<4x256xf32>
    %16 = arith.truncf %15 : vector<4x256xf32> to vector<4x256xbf16>
    %c0_11 = arith.constant 0 : index
    %c0_12 = arith.constant 0 : index
    %17 = vector.load %arg6[%c0_11, %c0_12] : memref<256x128xbf16, #tpu.memory_space<vmem>>, vector<256x128xbf16>
    %cst_13 = arith.constant dense<0.000000e+00> : vector<4x128xf32>
    %18 = tpu.matmul %16, %17, %cst_13 {dimension_numbers = #tpu.dot_dimension_numbers<[1], [0], [0], [1], [0, 0, 1, 1], [], []>} : vector<4x256xbf16>, vector<256x128xbf16>, vector<4x128xf32> -> vector<4x128xf32>
    %c0_14 = arith.constant 0 : index
    %c0_15 = arith.constant 0 : index
    %19 = vector.load %arg7[%c0_14, %c0_15] : memref<1x128xf32, #tpu.memory_space<vmem>>, vector<1x128xf32>
    %20 = vector.broadcast %19 : vector<1x128xf32> to vector<4x128xf32>
    %21 = arith.addf %18, %20 : vector<4x128xf32>
    %cst_16 = arith.constant dense<0xFF800000> : vector<4xf32>
    %22 = vector.multi_reduction <maximumf>, %21, %cst_16 [1] : vector<4x128xf32> to vector<4xf32>
    %23 = vector.shape_cast %22 : vector<4xf32> to vector<4x1xf32>
    %24 = vector.broadcast %23 : vector<4x1xf32> to vector<4x128xf32>
    %25 = arith.subf %21, %24 : vector<4x128xf32>
    %26 = math.exp %25 : vector<4x128xf32>
    %cst_17 = arith.constant dense<0.000000e+00> : vector<4xf32>
    %27 = vector.multi_reduction <add>, %26, %cst_17 [1] : vector<4x128xf32> to vector<4xf32>
    %28 = vector.shape_cast %27 : vector<4xf32> to vector<4x1xf32>
    %29 = tpu.reciprocal %28 {approx = true} : vector<4x1xf32> -> vector<4x1xf32>
    %30 = vector.broadcast %29 : vector<4x1xf32> to vector<4x128xf32>
    %31 = arith.mulf %26, %30 : vector<4x128xf32>
    %c0_18 = arith.constant 0 : index
    %c0_19 = arith.constant 0 : index
    %32 = vector.load %arg8[%c0_18, %c0_19] : memref<4x128xf32, #tpu.memory_space<vmem>>, vector<4x128xf32>
    tpu.vector_store %arg8[%c0_18, %c0_19], %31 {strides = array<i32>} : memref<4x128xf32, #tpu.memory_space<vmem>>, vector<4x128xf32>,
    return
  }
  func.func @transform_0(%arg0: i32) -> (i32, i32) {
    %c0_i32 = arith.constant 0 : i32
    %c0_i32_0 = arith.constant 0 : i32
    return %arg0, %c0_i32 : i32, i32
  }
  func.func @transform_1(%arg0: i32) -> (i32, i32) {
    %c0_i32 = arith.constant 0 : i32
    %c0_i32_0 = arith.constant 0 : i32
    %c0_i32_1 = arith.constant 0 : i32
    return %c0_i32, %c0_i32_0 : i32, i32
  }
  func.func @transform_2(%arg0: i32) -> (i32, i32) {
    %c0_i32 = arith.constant 0 : i32
    %c0_i32_0 = arith.constant 0 : i32
    %c0_i32_1 = arith.constant 0 : i32
    return %c0_i32, %c0_i32_0 : i32, i32
  }
  func.func @transform_3(%arg0: i32) -> (i32, i32) {
    %c0_i32 = arith.constant 0 : i32
    %c0_i32_0 = arith.constant 0 : i32
    %c0_i32_1 = arith.constant 0 : i32
    return %c0_i32, %c0_i32_0 : i32, i32
  }
  func.func @transform_4(%arg0: i32) -> (i32, i32) {
    %c0_i32 = arith.constant 0 : i32
    %c0_i32_0 = arith.constant 0 : i32
    %c0_i32_1 = arith.constant 0 : i32
    return %c0_i32, %c0_i32_0 : i32, i32
  }
  func.func @transform_5(%arg0: i32) -> (i32, i32) {
    %c0_i32 = arith.constant 0 : i32
    %c0_i32_0 = arith.constant 0 : i32
    %c0_i32_1 = arith.constant 0 : i32
    return %c0_i32, %c0_i32_0 : i32, i32
  }
  func.func @transform_6(%arg0: i32) -> (i32, i32) {
    %c0_i32 = arith.constant 0 : i32
    %c0_i32_0 = arith.constant 0 : i32
    %c0_i32_1 = arith.constant 0 : i32
    return %c0_i32, %c0_i32_0 : i32, i32
  }
  func.func @transform_7(%arg0: i32) -> (i32, i32) {
    %c0_i32 = arith.constant 0 : i32
    %c0_i32_0 = arith.constant 0 : i32
    return %arg0, %c0_i32 : i32, i32
  }
}

</mosaic_0001>

<llo_original>
// kernel: tpu_custom_call.1
$region0: #{tpu_custom_call.1}
  #allocation0 [shape = 'u32[]', space=smem, size = 0x4, offset = 0x4, fixed_abs, tag = 'smem constant byte address 0x4 - core index']
  #allocation1 [shape = 'u32[144,128]{1,0:T(1,128)}', space=vmem, size = 0x12000, scoped, tag = 'internal scratch']
  %s0 = inlined_call_operand.hbm [shape: f32[4,768], index: 0, kind: input, shape index: {}]
  %s1 = inlined_call_operand.hbm [shape: bf16[768,768], index: 1, kind: input, shape index: {}]
  %s2 = inlined_call_operand.hbm [shape: f32[1,768], index: 2, kind: input, shape index: {}]
  %s3 = inlined_call_operand.hbm [shape: bf16[768,256], index: 3, kind: input, shape index: {}]
  %s4 = inlined_call_operand.hbm [shape: f32[1,256], index: 4, kind: input, shape index: {}]
  %s5 = inlined_call_operand.hbm [shape: bf16[256,128], index: 5, kind: input, shape index: {}]
  %s6 = inlined_call_operand.hbm [shape: f32[1,128], index: 6, kind: input, shape index: {}]
  %s7 = inlined_call_operand.hbm [shape: f32[4,128], index: 7, kind: output, shape index: {}]
  %s8 = sld [smem:[#allocation0]]
  $region66: #{tpu_custom_call.1} parent=0
    _
  %s10 = ssub.s32 1, %s8
  %s11 = scalar_select 0, %s10, %s8
  $region1: #{tpu_custom_call.1} parent=0
    #allocation2 [shape = 'u8[12288]{0}', space=vmem, size = 0x3000, scoped, tag = 'input window, operand 0, single buffered']
    #allocation3 [shape = 's32[1]{0}', space=sflag, size = 0x4, scoped, tag = 'scoped memory for tpu_custom_call.1']
    #allocation4 [shape = 's32[1]{0}', space=sflag, size = 0x4, scoped, tag = 'scoped memory for tpu_custom_call.1']
    #allocation5 [shape = 'u8[1179648]{0}', space=vmem, size = 0x120000, scoped, tag = 'input window, operand 1, single buffered']
    #allocation6 [shape = 's32[1]{0}', space=sflag, size = 0x4, scoped, tag = 'scoped memory for tpu_custom_call.1']
    #allocation7 [shape = 'u8[3072]{0}', space=vmem, size = 0xc00, scoped, tag = 'input window, operand 2, single buffered']
    #allocation8 [shape = 'u8[393216]{0}', space=vmem, size = 0x60000, scoped, tag = 'input window, operand 3, single buffered']
    #allocation9 [shape = 's32[1]{0}', space=sflag, size = 0x4, scoped, tag = 'scoped memory for tpu_custom_call.1']
    #allocation10 [shape = 'u8[1024]{0}', space=vmem, size = 0x400, scoped, tag = 'input window, operand 4, single buffered']
    #allocation11 [shape = 'u8[65536]{0}', space=vmem, size = 0x10000, scoped, tag = 'input window, operand 5, single buffered']
    #allocation12 [shape = 's32[1]{0}', space=sflag, size = 0x4, scoped, tag = 'scoped memory for tpu_custom_call.1']
    #allocation13 [shape = 'u8[512]{0}', space=vmem, size = 0x400, scoped, tag = 'input window, operand 6, single buffered']
    #allocation14 [shape = 'u8[2048]{0}', space=vmem, size = 0x800, scoped, tag = 'output window, operand 0, single buffered']
    %12 = vsyncpa [#allocation3], 0
    %13 = vsyncpa [#allocation6], 0
    %14 = vsyncpa [#allocation9], 0
    %15 = vsyncpa [#allocation12], 0
    %16 = vsyncpa [#allocation4], 0
    // Predicated region
    $region2: #{tpu_custom_call.1} parent=1 // pred_check
      _
    $region3: #{tpu_custom_call.1} parent=1 // pred_check_branch
      %18 = sbr.rel (0) target = $region5
    $region4: #{tpu_custom_call.1} parent=1 // pred_region
      %s20 = ssub.s32 384, 384
      %21 = vsyncadd [#allocation3], %s20
      %s23 = sshll.u32 [#allocation2], 4
      %s24 = int_to_ptr.vmem [resolvable:$true] %s23
      %26 = dma.hbm_to_vmem [thread:$0]  %s0, 384, %s24, [#allocation3]
    $region5: #{tpu_custom_call.1} parent=1 // pred_fallthru
      _
    // Predicated region
    $region6: #{tpu_custom_call.1} parent=1 // pred_check
      _
    $region7: #{tpu_custom_call.1} parent=1 // pred_check_branch
      %28 = sbr.rel (0) target = $region9
    $region8: #{tpu_custom_call.1} parent=1 // pred_region
      %s30 = ssub.s32 36864, 36864
      %31 = vsyncadd [#allocation6], %s30
      %s32 = sshll.u32 [#allocation5], 4
      %s33 = int_to_ptr.vmem [resolvable:$true] %s32
      %38 = dma.hbm_to_vmem [thread:$0]  %s1, 36864, %s33, [#allocation6], 384, 384, 24
    $region9: #{tpu_custom_call.1} parent=1 // pred_fallthru
      _
    // Predicated region
    $region10: #{tpu_custom_call.1} parent=1 // pred_check
      _
    $region11: #{tpu_custom_call.1} parent=1 // pred_check_branch
      %40 = sbr.rel (0) target = $region13
    $region12: #{tpu_custom_call.1} parent=1 // pred_region
      %s42 = ssub.s32 96, 96
      %43 = vsyncadd [#allocation6], %s42
      %s45 = sshll.u32 [#allocation7], 4
      %s46 = int_to_ptr.vmem [resolvable:$true] %s45
      %48 = dma.hbm_to_vmem [thread:$0]  %s2, 96, %s46, [#allocation6]
    $region13: #{tpu_custom_call.1} parent=1 // pred_fallthru
      _
    // Predicated region
    $region14: #{tpu_custom_call.1} parent=1 // pred_check
      _
    $region15: #{tpu_custom_call.1} parent=1 // pred_check_branch
      %50 = sbr.rel (0) target = $region17
    $region16: #{tpu_custom_call.1} parent=1 // pred_region
      %s52 = ssub.s32 12288, 12288
      %53 = vsyncadd [#allocation9], %s52
      %s54 = sshll.u32 [#allocation8], 4
      %s55 = int_to_ptr.vmem [resolvable:$true] %s54
      %60 = dma.hbm_to_vmem [thread:$0]  %s3, 12288, %s55, [#allocation9], 128, 128, 8
    $region17: #{tpu_custom_call.1} parent=1 // pred_fallthru
      _
    // Predicated region
    $region18: #{tpu_custom_call.1} parent=1 // pred_check
      _
    $region19: #{tpu_custom_call.1} parent=1 // pred_check_branch
      %62 = sbr.rel (0) target = $region21
    $region20: #{tpu_custom_call.1} parent=1 // pred_region
      %s64 = ssub.s32 32, 32
      %65 = vsyncadd [#allocation9], %s64
      %s67 = sshll.u32 [#allocation10], 4
      %s68 = int_to_ptr.vmem [resolvable:$true] %s67
      %70 = dma.hbm_to_vmem [thread:$0]  %s4, 32, %s68, [#allocation9]
    $region21: #{tpu_custom_call.1} parent=1 // pred_fallthru
      _
    // Predicated region
    $region22: #{tpu_custom_call.1} parent=1 // pred_check
      _
    $region23: #{tpu_custom_call.1} parent=1 // pred_check_branch
      %72 = sbr.rel (0) target = $region25
    $region24: #{tpu_custom_call.1} parent=1 // pred_region
      %s74 = ssub.s32 2048, 2048
      %75 = vsyncadd [#allocation12], %s74
      %s76 = sshll.u32 [#allocation11], 4
      %s77 = int_to_ptr.vmem [resolvable:$true] %s76
      %82 = dma.hbm_to_vmem [thread:$0]  %s5, 2048, %s77, [#allocation12], 64, 64, 4
    $region25: #{tpu_custom_call.1} parent=1 // pred_fallthru
      _
    // Predicated region
    $region26: #{tpu_custom_call.1} parent=1 // pred_check
      _
    $region27: #{tpu_custom_call.1} parent=1 // pred_check_branch
      %84 = sbr.rel (0) target = $region29
    $region28: #{tpu_custom_call.1} parent=1 // pred_region
      %s86 = ssub.s32 16, 16
      %87 = vsyncadd [#allocation12], %s86
      %s89 = sshll.u32 [#allocation13], 4
      %s90 = int_to_ptr.vmem [resolvable:$true] %s89
      %92 = dma.hbm_to_vmem [thread:$0]  %s6, 16, %s90, [#allocation12]
    $region29: #{tpu_custom_call.1} parent=1 // pred_fallthru
      _
    // Predicated region
    $region30: #{tpu_custom_call.1} parent=1 // pred_check
      _
    $region31: #{tpu_custom_call.1} parent=1 // pred_check_branch
      %94 = sbr.rel (0) target = $region33
    $region32: #{tpu_custom_call.1} parent=1 // pred_region
      %95 = dma.done [#allocation3], 384
    $region33: #{tpu_custom_call.1} parent=1 // pred_fallthru
      _
    // Predicated region
    $region34: #{tpu_custom_call.1} parent=1 // pred_check
      _
    $region35: #{tpu_custom_call.1} parent=1 // pred_check_branch
      %97 = sbr.rel (0) target = $region37
    $region36: #{tpu_custom_call.1} parent=1 // pred_region
      %98 = dma.done [#allocation6], 36864
    $region37: #{tpu_custom_call.1} parent=1 // pred_fallthru
      _
    // Predicated region
    $region38: #{tpu_custom_call.1} parent=1 // pred_check
      _
    $region39: #{tpu_custom_call.1} parent=1 // pred_check_branch
      %100 = sbr.rel (0) target = $region41
    $region40: #{tpu_custom_call.1} parent=1 // pred_region
      %101 = dma.done [#allocation6], 96
    $region41: #{tpu_custom_call.1} parent=1 // pred_fallthru
      _
    // Predicated region
    $region42: #{tpu_custom_call.1} parent=1 // pred_check
      _
    $region43: #{tpu_custom_call.1} parent=1 // pred_check_branch
      %103 = sbr.rel (0) target = $region45
    $region44: #{tpu_custom_call.1} parent=1 // pred_region
      %104 = dma.done [#allocation9], 12288
    $region45: #{tpu_custom_call.1} parent=1 // pred_fallthru
      _
    // Predicated region
    $region46: #{tpu_custom_call.1} parent=1 // pred_check
      _
    $region47: #{tpu_custom_call.1} parent=1 // pred_check_branch
      %106 = sbr.rel (0) target = $region49
    $region48: #{tpu_custom_call.1} parent=1 // pred_region
      %107 = dma.done [#allocation9], 32
    $region49: #{tpu_custom_call.1} parent=1 // pred_fallthru
      _
    // Predicated region
    $region50: #{tpu_custom_call.1} parent=1 // pred_check
      _
    $region51: #{tpu_custom_call.1} parent=1 // pred_check_branch
      %109 = sbr.rel (0) target = $region53
    $region52: #{tpu_custom_call.1} parent=1 // pred_region
      %110 = dma.done [#allocation12], 2048
    $region53: #{tpu_custom_call.1} parent=1 // pred_fallthru
      _
    // Predicated region
    $region54: #{tpu_custom_call.1} parent=1 // pred_check
      _
    $region55: #{tpu_custom_call.1} parent=1 // pred_check_branch
      %112 = sbr.rel (0) target = $region57
    $region56: #{tpu_custom_call.1} parent=1 // pred_region
      %113 = dma.done [#allocation12], 16
    $region57: #{tpu_custom_call.1} parent=1 // pred_fallthru
      _
    %v115 = vld [vmem:[#allocation2] sm:$0xff]
    %v116 = vld [vmem:[#allocation2 + $0x8] sm:$0xff]
    %v117 = vld [vmem:[#allocation2 + $0x10] sm:$0xff]
    %v121 = vcombine.high %v115, %v115
    %v122 = vcombine.high %v116, %v116
    %v123 = vcombine.high %v117, %v117
    %v127 = vpack.c.bf16 %v115, %v115
    %v128 = vpack.c.bf16 %v121, %v121
    %v129 = vpack.c.bf16 %v116, %v116
    %v130 = vpack.c.bf16 %v122, %v122
    %v131 = vpack.c.bf16 %v117, %v117
    %v132 = vpack.c.bf16 %v123, %v123
    %v133 = vld [vmem:[#allocation5] sm:$0xff]
    %v134 = vld [vmem:[#allocation5 + $0x8] sm:$0xff]
    %v135 = vld [vmem:[#allocation5 + $0x10] sm:$0xff]
    %v136 = vld [vmem:[#allocation5 + $0x18] sm:$0xff]
    %v137 = vld [vmem:[#allocation5 + $0x20] sm:$0xff]
    %v138 = vld [vmem:[#allocation5 + $0x28] sm:$0xff]
    %v139 = vld [vmem:[#allocation5 + $0x30] sm:$0xff]
    %v140 = vld [vmem:[#allocation5 + $0x38] sm:$0xff]
    %v141 = vld [vmem:[#allocation5 + $0x40] sm:$0xff]
    %v142 = vld [vmem:[#allocation5 + $0x48] sm:$0xff]
    %v143 = vld [vmem:[#allocation5 + $0x50] sm:$0xff]
    %v144 = vld [vmem:[#allocation5 + $0x58] sm:$0xff]
    %v145 = vld [vmem:[#allocation5 + $0x60] sm:$0xff]
    %v146 = vld [vmem:[#allocation5 + $0x68] sm:$0xff]
    %v147 = vld [vmem:[#allocation5 + $0x70] sm:$0xff]
    %v148 = vld [vmem:[#allocation5 + $0x78] sm:$0xff]
    %v149 = vld [vmem:[#allocation5 + $0x80] sm:$0xff]
    %v150 = vld [vmem:[#allocation5 + $0x88] sm:$0xff]
    %v151 = vld [vmem:[#allocation5 + $0x90] sm:$0xff]
    %v152 = vld [vmem:[#allocation5 + $0x98] sm:$0xff]
    %v153 = vld [vmem:[#allocation5 + $0xa0] sm:$0xff]
    %v154 = vld [vmem:[#allocation5 + $0xa8] sm:$0xff]
    %v155 = vld [vmem:[#allocation5 + $0xb0] sm:$0xff]
    %v156 = vld [vmem:[#allocation5 + $0xb8] sm:$0xff]
    %v157 = vld [vmem:[#allocation5 + $0xc0] sm:$0xff]
    %v158 = vld [vmem:[#allocation5 + $0xc8] sm:$0xff]
    %v159 = vld [vmem:[#allocation5 + $0xd0] sm:$0xff]
    %v160 = vld [vmem:[#allocation5 + $0xd8] sm:$0xff]
    %v161 = vld [vmem:[#allocation5 + $0xe0] sm:$0xff]
    %v162 = vld [vmem:[#allocation5 + $0xe8] sm:$0xff]
    %v163 = vld [vmem:[#allocation5 + $0xf0] sm:$0xff]
    %v164 = vld [vmem:[#allocation5 + $0xf8] sm:$0xff]
    %v165 = vld [vmem:[#allocation5 + $0x100] sm:$0xff]
    %v166 = vld [vmem:[#allocation5 + $0x108] sm:$0xff]
    %v167 = vld [vmem:[#allocation5 + $0x110] sm:$0xff]
    %v168 = vld [vmem:[#allocation5 + $0x118] sm:$0xff]
    %v169 = vld [vmem:[#allocation5 + $0x120] sm:$0xff]
    %v170 = vld [vmem:[#allocation5 + $0x128] sm:$0xff]
    %v171 = vld [vmem:[#allocation5 + $0x130] sm:$0xff]
    %v172 = vld [vmem:[#allocation5 + $0x138] sm:$0xff]
    %v173 = vld [vmem:[#allocation5 + $0x140] sm:$0xff]
    %v174 = vld [vmem:[#allocation5 + $0x148] sm:$0xff]
    %v175 = vld [vmem:[#allocation5 + $0x150] sm:$0xff]
    %v176 = vld [vmem:[#allocation5 + $0x158] sm:$0xff]
    %v177 = vld [vmem:[#allocation5 + $0x160] sm:$0xff]
    %v178 = vld [vmem:[#allocation5 + $0x168] sm:$0xff]
    %v179 = vld [vmem:[#allocation5 + $0x170] sm:$0xff]
    %v180 = vld [vmem:[#allocation5 + $0x178] sm:$0xff]
    %v181 = vld [vmem:[#allocation5 + $0x180] sm:$0xff]
    %v182 = vld [vmem:[#allocation5 + $0x188] sm:$0xff]
    %v183 = vld [vmem:[#allocation5 + $0x190] sm:$0xff]
    %v184 = vld [vmem:[#allocation5 + $0x198] sm:$0xff]
    %v185 = vld [vmem:[#allocation5 + $0x1a0] sm:$0xff]
    %v186 = vld [vmem:[#allocation5 + $0x1a8] sm:$0xff]
    %v187 = vld [vmem:[#allocation5 + $0x1b0] sm:$0xff]
    %v188 = vld [vmem:[#allocation5 + $0x1b8] sm:$0xff]
    %v189 = vld [vmem:[#allocation5 + $0x1c0] sm:$0xff]
    %v190 = vld [vmem:[#allocation5 + $0x1c8] sm:$0xff]
    %v191 = vld [vmem:[#allocation5 + $0x1d0] sm:$0xff]
    %v192 = vld [vmem:[#allocation5 + $0x1d8] sm:$0xff]
    %v193 = vld [vmem:[#allocation5 + $0x1e0] sm:$0xff]
    %v194 = vld [vmem:[#allocation5 + $0x1e8] sm:$0xff]
    %v195 = vld [vmem:[#allocation5 + $0x1f0] sm:$0xff]
    %v196 = vld [vmem:[#allocation5 + $0x1f8] sm:$0xff]
    %v197 = vld [vmem:[#allocation5 + $0x200] sm:$0xff]
    %v198 = vld [vmem:[#allocation5 + $0x208] sm:$0xff]
    %v199 = vld [vmem:[#allocation5 + $0x210] sm:$0xff]
    %v200 = vld [vmem:[#allocation5 + $0x218] sm:$0xff]
    %v201 = vld [vmem:[#allocation5 + $0x220] sm:$0xff]
    %v202 = vld [vmem:[#allocation5 + $0x228] sm:$0xff]
    %v203 = vld [vmem:[#allocation5 + $0x230] sm:$0xff]
    %v204 = vld [vmem:[#allocation5 + $0x238] sm:$0xff]
    %v205 = vld [vmem:[#allocation5 + $0x240] sm:$0xff]
    %v206 = vld [vmem:[#allocation5 + $0x248] sm:$0xff]
    %v207 = vld [vmem:[#allocation5 + $0x250] sm:$0xff]
    %v208 = vld [vmem:[#allocation5 + $0x258] sm:$0xff]
    %v209 = vld [vmem:[#allocation5 + $0x260] sm:$0xff]
    %v210 = vld [vmem:[#allocation5 + $0x268] sm:$0xff]
    %v211 = vld [vmem:[#allocation5 + $0x270] sm:$0xff]
    %v212 = vld [vmem:[#allocation5 + $0x278] sm:$0xff]
    %v213 = vld [vmem:[#allocation5 + $0x280] sm:$0xff]
    %v214 = vld [vmem:[#allocation5 + $0x288] sm:$0xff]
    %v215 = vld [vmem:[#allocation5 + $0x290] sm:$0xff]
    %v216 = vld [vmem:[#allocation5 + $0x298] sm:$0xff]
    %v217 = vld [vmem:[#allocation5 + $0x2a0] sm:$0xff]
    %v218 = vld [vmem:[#allocation5 + $0x2a8] sm:$0xff]
    %v219 = vld [vmem:[#allocation5 + $0x2b0] sm:$0xff]
    %v220 = vld [vmem:[#allocation5 + $0x2b8] sm:$0xff]
    %v221 = vld [vmem:[#allocation5 + $0x2c0] sm:$0xff]
    %v222 = vld [vmem:[#allocation5 + $0x2c8] sm:$0xff]
    %v223 = vld [vmem:[#allocation5 + $0x2d0] sm:$0xff]
    %v224 = vld [vmem:[#allocation5 + $0x2d8] sm:$0xff]
    %v225 = vld [vmem:[#allocation5 + $0x2e0] sm:$0xff]
    %v226 = vld [vmem:[#allocation5 + $0x2e8] sm:$0xff]
    %v227 = vld [vmem:[#allocation5 + $0x2f0] sm:$0xff]
    %v228 = vld [vmem:[#allocation5 + $0x2f8] sm:$0xff]
    %v229 = vld [vmem:[#allocation5 + $0x300] sm:$0xff]
    %v230 = vld [vmem:[#allocation5 + $0x308] sm:$0xff]
    %v231 = vld [vmem:[#allocation5 + $0x310] sm:$0xff]
    %v232 = vld [vmem:[#allocation5 + $0x318] sm:$0xff]
    %v233 = vld [vmem:[#allocation5 + $0x320] sm:$0xff]
    %v234 = vld [vmem:[#allocation5 + $0x328] sm:$0xff]
    %v235 = vld [vmem:[#allocation5 + $0x330] sm:$0xff]
    %v236 = vld [vmem:[#allocation5 + $0x338] sm:$0xff]
    %v237 = vld [vmem:[#allocation5 + $0x340] sm:$0xff]
    %v238 = vld [vmem:[#allocation5 + $0x348] sm:$0xff]
    %v239 = vld [vmem:[#allocation5 + $0x350] sm:$0xff]
    %v240 = vld [vmem:[#allocation5 + $0x358] sm:$0xff]
    %v241 = vld [vmem:[#allocation5 + $0x360] sm:$0xff]
    %v242 = vld [vmem:[#allocation5 + $0x368] sm:$0xff]
    %v243 = vld [vmem:[#allocation5 + $0x370] sm:$0xff]
    %v244 = vld [vmem:[#allocation5 + $0x378] sm:$0xff]
    %v245 = vld [vmem:[#allocation5 + $0x380] sm:$0xff]
    %v246 = vld [vmem:[#allocation5 + $0x388] sm:$0xff]
    %v247 = vld [vmem:[#allocation5 + $0x390] sm:$0xff]
    %v248 = vld [vmem:[#allocation5 + $0x398] sm:$0xff]
    %v249 = vld [vmem:[#allocation5 + $0x3a0] sm:$0xff]
    %v250 = vld [vmem:[#allocation5 + $0x3a8] sm:$0xff]
    %v251 = vld [vmem:[#allocation5 + $0x3b0] sm:$0xff]
    %v252 = vld [vmem:[#allocation5 + $0x3b8] sm:$0xff]
    %v253 = vld [vmem:[#allocation5 + $0x3c0] sm:$0xff]
    %v254 = vld [vmem:[#allocation5 + $0x3c8] sm:$0xff]
    %v255 = vld [vmem:[#allocation5 + $0x3d0] sm:$0xff]
    %v256 = vld [vmem:[#allocation5 + $0x3d8] sm:$0xff]
    %v257 = vld [vmem:[#allocation5 + $0x3e0] sm:$0xff]
    %v258 = vld [vmem:[#allocation5 + $0x3e8] sm:$0xff]
    %v259 = vld [vmem:[#allocation5 + $0x3f0] sm:$0xff]
    %v260 = vld [vmem:[#allocation5 + $0x3f8] sm:$0xff]
    %v261 = vld [vmem:[#allocation5 + $0x400] sm:$0xff]
    %v262 = vld [vmem:[#allocation5 + $0x408] sm:$0xff]
    %v263 = vld [vmem:[#allocation5 + $0x410] sm:$0xff]
    %v264 = vld [vmem:[#allocation5 + $0x418] sm:$0xff]
    %v265 = vld [vmem:[#allocation5 + $0x420] sm:$0xff]
    %v266 = vld [vmem:[#allocation5 + $0x428] sm:$0xff]
    %v267 = vld [vmem:[#allocation5 + $0x430] sm:$0xff]
    %v268 = vld [vmem:[#allocation5 + $0x438] sm:$0xff]
    %v269 = vld [vmem:[#allocation5 + $0x440] sm:$0xff]
    %v270 = vld [vmem:[#allocation5 + $0x448] sm:$0xff]
    %v271 = vld [vmem:[#allocation5 + $0x450] sm:$0xff]
    %v272 = vld [vmem:[#allocation5 + $0x458] sm:$0xff]
    %v273 = vld [vmem:[#allocation5 + $0x460] sm:$0xff]
    %v274 = vld [vmem:[#allocation5 + $0x468] sm:$0xff]
    %v275 = vld [vmem:[#allocation5 + $0x470] sm:$0xff]
    %v276 = vld [vmem:[#allocation5 + $0x478] sm:$0xff]
    %v277 = vld [vmem:[#allocation5 + $0x480] sm:$0xff]
    %v278 = vld [vmem:[#allocation5 + $0x488] sm:$0xff]
    %v279 = vld [vmem:[#allocation5 + $0x490] sm:$0xff]
    %v280 = vld [vmem:[#allocation5 + $0x498] sm:$0xff]
    %v281 = vld [vmem:[#allocation5 + $0x4a0] sm:$0xff]
    %v282 = vld [vmem:[#allocation5 + $0x4a8] sm:$0xff]
    %v283 = vld [vmem:[#allocation5 + $0x4b0] sm:$0xff]
    %v284 = vld [vmem:[#allocation5 + $0x4b8] sm:$0xff]
    %v285 = vld [vmem:[#allocation5 + $0x4c0] sm:$0xff]
    %v286 = vld [vmem:[#allocation5 + $0x4c8] sm:$0xff]
    %v287 = vld [vmem:[#allocation5 + $0x4d0] sm:$0xff]
    %v288 = vld [vmem:[#allocation5 + $0x4d8] sm:$0xff]
    %v289 = vld [vmem:[#allocation5 + $0x4e0] sm:$0xff]
    %v290 = vld [vmem:[#allocation5 + $0x4e8] sm:$0xff]
    %v291 = vld [vmem:[#allocation5 + $0x4f0] sm:$0xff]
    %v292 = vld [vmem:[#allocation5 + $0x4f8] sm:$0xff]
    %v293 = vld [vmem:[#allocation5 + $0x500] sm:$0xff]
    %v294 = vld [vmem:[#allocation5 + $0x508] sm:$0xff]
    %v295 = vld [vmem:[#allocation5 + $0x510] sm:$0xff]
    %v296 = vld [vmem:[#allocation5 + $0x518] sm:$0xff]
    %v297 = vld [vmem:[#allocation5 + $0x520] sm:$0xff]
    %v298 = vld [vmem:[#allocation5 + $0x528] sm:$0xff]
    %v299 = vld [vmem:[#allocation5 + $0x530] sm:$0xff]
    %v300 = vld [vmem:[#allocation5 + $0x538] sm:$0xff]
    %v301 = vld [vmem:[#allocation5 + $0x540] sm:$0xff]
    %v302 = vld [vmem:[#allocation5 + $0x548] sm:$0xff]
    %v303 = vld [vmem:[#allocation5 + $0x550] sm:$0xff]
    %v304 = vld [vmem:[#allocation5 + $0x558] sm:$0xff]
    %v305 = vld [vmem:[#allocation5 + $0x560] sm:$0xff]
    %v306 = vld [vmem:[#allocation5 + $0x568] sm:$0xff]
    %v307 = vld [vmem:[#allocation5 + $0x570] sm:$0xff]
    %v308 = vld [vmem:[#allocation5 + $0x578] sm:$0xff]
    %v309 = vld [vmem:[#allocation5 + $0x580] sm:$0xff]
    %v310 = vld [vmem:[#allocation5 + $0x588] sm:$0xff]
    %v311 = vld [vmem:[#allocation5 + $0x590] sm:$0xff]
    %v312 = vld [vmem:[#allocation5 + $0x598] sm:$0xff]
    %v313 = vld [vmem:[#allocation5 + $0x5a0] sm:$0xff]
    %v314 = vld [vmem:[#allocation5 + $0x5a8] sm:$0xff]
    %v315 = vld [vmem:[#allocation5 + $0x5b0] sm:$0xff]
    %v316 = vld [vmem:[#allocation5 + $0x5b8] sm:$0xff]
    %v317 = vld [vmem:[#allocation5 + $0x5c0] sm:$0xff]
    %v318 = vld [vmem:[#allocation5 + $0x5c8] sm:$0xff]
    %v319 = vld [vmem:[#allocation5 + $0x5d0] sm:$0xff]
    %v320 = vld [vmem:[#allocation5 + $0x5d8] sm:$0xff]
    %v321 = vld [vmem:[#allocation5 + $0x5e0] sm:$0xff]
    %v322 = vld [vmem:[#allocation5 + $0x5e8] sm:$0xff]
    %v323 = vld [vmem:[#allocation5 + $0x5f0] sm:$0xff]
    %v324 = vld [vmem:[#allocation5 + $0x5f8] sm:$0xff]
    %v325 = vld [vmem:[#allocation5 + $0x600] sm:$0xff]
    %v326 = vld [vmem:[#allocation5 + $0x608] sm:$0xff]
    %v327 = vld [vmem:[#allocation5 + $0x610] sm:$0xff]
    %v328 = vld [vmem:[#allocation5 + $0x618] sm:$0xff]
    %v329 = vld [vmem:[#allocation5 + $0x620] sm:$0xff]
    %v330 = vld [vmem:[#allocation5 + $0x628] sm:$0xff]
    %v331 = vld [vmem:[#allocation5 + $0x630] sm:$0xff]
    %v332 = vld [vmem:[#allocation5 + $0x638] sm:$0xff]
    %v333 = vld [vmem:[#allocation5 + $0x640] sm:$0xff]
    %v334 = vld [vmem:[#allocation5 + $0x648] sm:$0xff]
    %v335 = vld [vmem:[#allocation5 + $0x650] sm:$0xff]
    %v336 = vld [vmem:[#allocation5 + $0x658] sm:$0xff]
    %v337 = vld [vmem:[#allocation5 + $0x660] sm:$0xff]
    %v338 = vld [vmem:[#allocation5 + $0x668] sm:$0xff]
    %v339 = vld [vmem:[#allocation5 + $0x670] sm:$0xff]
    %v340 = vld [vmem:[#allocation5 + $0x678] sm:$0xff]
    %v341 = vld [vmem:[#allocation5 + $0x680] sm:$0xff]
    %v342 = vld [vmem:[#allocation5 + $0x688] sm:$0xff]
    %v343 = vld [vmem:[#allocation5 + $0x690] sm:$0xff]
    %v344 = vld [vmem:[#allocation5 + $0x698] sm:$0xff]
    %v345 = vld [vmem:[#allocation5 + $0x6a0] sm:$0xff]
    %v346 = vld [vmem:[#allocation5 + $0x6a8] sm:$0xff]
    %v347 = vld [vmem:[#allocation5 + $0x6b0] sm:$0xff]
    %v348 = vld [vmem:[#allocation5 + $0x6b8] sm:$0xff]
    %v349 = vld [vmem:[#allocation5 + $0x6c0] sm:$0xff]
    %v350 = vld [vmem:[#allocation5 + $0x6c8] sm:$0xff]
    %v351 = vld [vmem:[#allocation5 + $0x6d0] sm:$0xff]
    %v352 = vld [vmem:[#allocation5 + $0x6d8] sm:$0xff]
    %v353 = vld [vmem:[#allocation5 + $0x6e0] sm:$0xff]
    %v354 = vld [vmem:[#allocation5 + $0x6e8] sm:$0xff]
    %v355 = vld [vmem:[#allocation5 + $0x6f0] sm:$0xff]
    %v356 = vld [vmem:[#allocation5 + $0x6f8] sm:$0xff]
    %v357 = vld [vmem:[#allocation5 + $0x700] sm:$0xff]
    %v358 = vld [vmem:[#allocation5 + $0x708] sm:$0xff]
    %v359 = vld [vmem:[#allocation5 + $0x710] sm:$0xff]
    %v360 = vld [vmem:[#allocation5 + $0x718] sm:$0xff]
    %v361 = vld [vmem:[#allocation5 + $0x720] sm:$0xff]
    %v362 = vld [vmem:[#allocation5 + $0x728] sm:$0xff]
    %v363 = vld [vmem:[#allocation5 + $0x730] sm:$0xff]
    %v364 = vld [vmem:[#allocation5 + $0x738] sm:$0xff]
    %v365 = vld [vmem:[#allocation5 + $0x740] sm:$0xff]
    %v366 = vld [vmem:[#allocation5 + $0x748] sm:$0xff]
    %v367 = vld [vmem:[#allocation5 + $0x750] sm:$0xff]
    %v368 = vld [vmem:[#allocation5 + $0x758] sm:$0xff]
    %v369 = vld [vmem:[#allocation5 + $0x760] sm:$0xff]
    %v370 = vld [vmem:[#allocation5 + $0x768] sm:$0xff]
    %v371 = vld [vmem:[#allocation5 + $0x770] sm:$0xff]
    %v372 = vld [vmem:[#allocation5 + $0x778] sm:$0xff]
    %v373 = vld [vmem:[#allocation5 + $0x780] sm:$0xff]
    %v374 = vld [vmem:[#allocation5 + $0x788] sm:$0xff]
    %v375 = vld [vmem:[#allocation5 + $0x790] sm:$0xff]
    %v376 = vld [vmem:[#allocation5 + $0x798] sm:$0xff]
    %v377 = vld [vmem:[#allocation5 + $0x7a0] sm:$0xff]
    %v378 = vld [vmem:[#allocation5 + $0x7a8] sm:$0xff]
    %v379 = vld [vmem:[#allocation5 + $0x7b0] sm:$0xff]
    %v380 = vld [vmem:[#allocation5 + $0x7b8] sm:$0xff]
    %v381 = vld [vmem:[#allocation5 + $0x7c0] sm:$0xff]
    %v382 = vld [vmem:[#allocation5 + $0x7c8] sm:$0xff]
    %v383 = vld [vmem:[#allocation5 + $0x7d0] sm:$0xff]
    %v384 = vld [vmem:[#allocation5 + $0x7d8] sm:$0xff]
    %v385 = vld [vmem:[#allocation5 + $0x7e0] sm:$0xff]
    %v386 = vld [vmem:[#allocation5 + $0x7e8] sm:$0xff]
    %v387 = vld [vmem:[#allocation5 + $0x7f0] sm:$0xff]
    %v388 = vld [vmem:[#allocation5 + $0x7f8] sm:$0xff]
    %v389 = vld [vmem:[#allocation5 + $0x800] sm:$0xff]
    %v390 = vld [vmem:[#allocation5 + $0x808] sm:$0xff]
    %v391 = vld [vmem:[#allocation5 + $0x810] sm:$0xff]
    %v392 = vld [vmem:[#allocation5 + $0x818] sm:$0xff]
    %v393 = vld [vmem:[#allocation5 + $0x820] sm:$0xff]
    %v394 = vld [vmem:[#allocation5 + $0x828] sm:$0xff]
    %v395 = vld [vmem:[#allocation5 + $0x830] sm:$0xff]
    %v396 = vld [vmem:[#allocation5 + $0x838] sm:$0xff]
    %v397 = vld [vmem:[#allocation5 + $0x840] sm:$0xff]
    %v398 = vld [vmem:[#allocation5 + $0x848] sm:$0xff]
    %v399 = vld [vmem:[#allocation5 + $0x850] sm:$0xff]
    %v400 = vld [vmem:[#allocation5 + $0x858] sm:$0xff]
    %v401 = vld [vmem:[#allocation5 + $0x860] sm:$0xff]
    %v402 = vld [vmem:[#allocation5 + $0x868] sm:$0xff]
    %v403 = vld [vmem:[#allocation5 + $0x870] sm:$0xff]
    %v404 = vld [vmem:[#allocation5 + $0x878] sm:$0xff]
    %v405 = vld [vmem:[#allocation5 + $0x880] sm:$0xff]
    %v406 = vld [vmem:[#allocation5 + $0x888] sm:$0xff]
    %v407 = vld [vmem:[#allocation5 + $0x890] sm:$0xff]
    %v408 = vld [vmem:[#allocation5 + $0x898] sm:$0xff]
    %v409 = vld [vmem:[#allocation5 + $0x8a0] sm:$0xff]
    %v410 = vld [vmem:[#allocation5 + $0x8a8] sm:$0xff]
    %v411 = vld [vmem:[#allocation5 + $0x8b0] sm:$0xff]
    %v412 = vld [vmem:[#allocation5 + $0x8b8] sm:$0xff]
    %v413 = vld [vmem:[#allocation5 + $0x8c0] sm:$0xff]
    %v414 = vld [vmem:[#allocation5 + $0x8c8] sm:$0xff]
    %v415 = vld [vmem:[#allocation5 + $0x8d0] sm:$0xff]
    %v416 = vld [vmem:[#allocation5 + $0x8d8] sm:$0xff]
    %v417 = vld [vmem:[#allocation5 + $0x8e0] sm:$0xff]
    %v418 = vld [vmem:[#allocation5 + $0x8e8] sm:$0xff]
    %v419 = vld [vmem:[#allocation5 + $0x8f0] sm:$0xff]
    %v420 = vld [vmem:[#allocation5 + $0x8f8] sm:$0xff]
    %v421 = vld [vmem:[#allocation7] sm:$0x3f]
    %v423 = vlaneseq
    %v424 = vshrl.u32 %v423, 7
    %v425 = vsub.s32 0, %v424
    %v426 = vrot.slane %v421, %v425
    %v427 = vlaneseq
    %v428 = vshrl.u32 %v427, 7
    %v429 = vsub.s32 1, %v428
    %v430 = vrot.slane %v421, %v429
    %v431 = vlaneseq
    %v432 = vshrl.u32 %v431, 7
    %v433 = vsub.s32 2, %v432
    %v434 = vrot.slane %v421, %v433
    %v435 = vlaneseq
    %v436 = vshrl.u32 %v435, 7
    %v437 = vsub.s32 3, %v436
    %v438 = vrot.slane %v421, %v437
    %v439 = vlaneseq
    %v440 = vshrl.u32 %v439, 7
    %v441 = vsub.s32 4, %v440
    %v442 = vrot.slane %v421, %v441
    %v443 = vlaneseq
    %v444 = vshrl.u32 %v443, 7
    %v445 = vsub.s32 5, %v444
    %v446 = vrot.slane %v421, %v445
    %v741 = vunpack.c.l.b16 %v133
    %v742 = vunpack.c.h.b16 %v133
    %v743 = vunpack.c.l.b16 %v134
    %v744 = vunpack.c.h.b16 %v134
    %v745 = vunpack.c.l.b16 %v135
    %v746 = vunpack.c.h.b16 %v135
    %v747 = vunpack.c.l.b16 %v136
    %v748 = vunpack.c.h.b16 %v136
    %v749 = vunpack.c.l.b16 %v137
    %v750 = vunpack.c.h.b16 %v137
    %v751 = vunpack.c.l.b16 %v138
    %v752 = vunpack.c.h.b16 %v138
    %v753 = vunpack.c.l.b16 %v139
    %v754 = vunpack.c.h.b16 %v139
    %v755 = vunpack.c.l.b16 %v140
    %v756 = vunpack.c.h.b16 %v140
    %v757 = vunpack.c.l.b16 %v141
    %v758 = vunpack.c.h.b16 %v141
    %v759 = vunpack.c.l.b16 %v142
    %v760 = vunpack.c.h.b16 %v142
    %v761 = vunpack.c.l.b16 %v143
    %v762 = vunpack.c.h.b16 %v143
    %v763 = vunpack.c.l.b16 %v144
    %v764 = vunpack.c.h.b16 %v144
    %v765 = vunpack.c.l.b16 %v145
    %v766 = vunpack.c.h.b16 %v145
    %v767 = vunpack.c.l.b16 %v146
    %v768 = vunpack.c.h.b16 %v146
    %v769 = vunpack.c.l.b16 %v147
    %v770 = vunpack.c.h.b16 %v147
    %v771 = vunpack.c.l.b16 %v148
    %v772 = vunpack.c.h.b16 %v148
    %v773 = vunpack.c.l.b16 %v149
    %v774 = vunpack.c.h.b16 %v149
    %v775 = vunpack.c.l.b16 %v150
    %v776 = vunpack.c.h.b16 %v150
    %v777 = vunpack.c.l.b16 %v151
    %v778 = vunpack.c.h.b16 %v151
    %v779 = vunpack.c.l.b16 %v152
    %v780 = vunpack.c.h.b16 %v152
    %v781 = vunpack.c.l.b16 %v153
    %v782 = vunpack.c.h.b16 %v153
    %v783 = vunpack.c.l.b16 %v154
    %v784 = vunpack.c.h.b16 %v154
    %v785 = vunpack.c.l.b16 %v155
    %v786 = vunpack.c.h.b16 %v155
    %v787 = vunpack.c.l.b16 %v156
    %v788 = vunpack.c.h.b16 %v156
    %v789 = vunpack.c.l.b16 %v157
    %v790 = vunpack.c.h.b16 %v157
    %v791 = vunpack.c.l.b16 %v158
    %v792 = vunpack.c.h.b16 %v158
    %v793 = vunpack.c.l.b16 %v159
    %v794 = vunpack.c.h.b16 %v159
    %v795 = vunpack.c.l.b16 %v160
    %v796 = vunpack.c.h.b16 %v160
    %v797 = vunpack.c.l.b16 %v161
    %v798 = vunpack.c.h.b16 %v161
    %v799 = vunpack.c.l.b16 %v162
    %v800 = vunpack.c.h.b16 %v162
    %v801 = vunpack.c.l.b16 %v163
    %v802 = vunpack.c.h.b16 %v163
    %v803 = vunpack.c.l.b16 %v164
    %v804 = vunpack.c.h.b16 %v164
    %v805 = vunpack.c.l.b16 %v165
    %v806 = vunpack.c.h.b16 %v165
    %v807 = vunpack.c.l.b16 %v166
    %v808 = vunpack.c.h.b16 %v166
    %v809 = vunpack.c.l.b16 %v167
    %v810 = vunpack.c.h.b16 %v167
    %v811 = vunpack.c.l.b16 %v168
    %v812 = vunpack.c.h.b16 %v168
    %v813 = vunpack.c.l.b16 %v169
    %v814 = vunpack.c.h.b16 %v169
    %v815 = vunpack.c.l.b16 %v170
    %v816 = vunpack.c.h.b16 %v170
    %v817 = vunpack.c.l.b16 %v171
    %v818 = vunpack.c.h.b16 %v171
    %v819 = vunpack.c.l.b16 %v172
    %v820 = vunpack.c.h.b16 %v172
    %v821 = vunpack.c.l.b16 %v173
    %v822 = vunpack.c.h.b16 %v173
    %v823 = vunpack.c.l.b16 %v174
    %v824 = vunpack.c.h.b16 %v174
    %v825 = vunpack.c.l.b16 %v175
    %v826 = vunpack.c.h.b16 %v175
    %v827 = vunpack.c.l.b16 %v176
    %v828 = vunpack.c.h.b16 %v176
    %v829 = vunpack.c.l.b16 %v177
    %v830 = vunpack.c.h.b16 %v177
    %v831 = vunpack.c.l.b16 %v178
    %v832 = vunpack.c.h.b16 %v178
    %v833 = vunpack.c.l.b16 %v179
    %v834 = vunpack.c.h.b16 %v179
    %v835 = vunpack.c.l.b16 %v180
    %v836 = vunpack.c.h.b16 %v180
    %v837 = vunpack.c.l.b16 %v181
    %v838 = vunpack.c.h.b16 %v181
    %v839 = vunpack.c.l.b16 %v182
    %v840 = vunpack.c.h.b16 %v182
    %v841 = vunpack.c.l.b16 %v183
    %v842 = vunpack.c.h.b16 %v183
    %v843 = vunpack.c.l.b16 %v184
    %v844 = vunpack.c.h.b16 %v184
    %v845 = vunpack.c.l.b16 %v185
    %v846 = vunpack.c.h.b16 %v185
    %v847 = vunpack.c.l.b16 %v186
    %v848 = vunpack.c.h.b16 %v186
    %v849 = vunpack.c.l.b16 %v187
    %v850 = vunpack.c.h.b16 %v187
    %v851 = vunpack.c.l.b16 %v188
    %v852 = vunpack.c.h.b16 %v188
    %v853 = vunpack.c.l.b16 %v189
    %v854 = vunpack.c.h.b16 %v189
    %v855 = vunpack.c.l.b16 %v190
    %v856 = vunpack.c.h.b16 %v190
    %v857 = vunpack.c.l.b16 %v191
    %v858 = vunpack.c.h.b16 %v191
    %v859 = vunpack.c.l.b16 %v192
    %v860 = vunpack.c.h.b16 %v192
    %v861 = vunpack.c.l.b16 %v193
    %v862 = vunpack.c.h.b16 %v193
    %v863 = vunpack.c.l.b16 %v194
    %v864 = vunpack.c.h.b16 %v194
    %v865 = vunpack.c.l.b16 %v195
    %v866 = vunpack.c.h.b16 %v195
    %v867 = vunpack.c.l.b16 %v196
    %v868 = vunpack.c.h.b16 %v196
    %v869 = vunpack.c.l.b16 %v197
    %v870 = vunpack.c.h.b16 %v197
    %v871 = vunpack.c.l.b16 %v198
    %v872 = vunpack.c.h.b16 %v198
    %v873 = vunpack.c.l.b16 %v199
    %v874 = vunpack.c.h.b16 %v199
    %v875 = vunpack.c.l.b16 %v200
    %v876 = vunpack.c.h.b16 %v200
    %v877 = vunpack.c.l.b16 %v201
    %v878 = vunpack.c.h.b16 %v201
    %v879 = vunpack.c.l.b16 %v202
    %v880 = vunpack.c.h.b16 %v202
    %v881 = vunpack.c.l.b16 %v203
    %v882 = vunpack.c.h.b16 %v203
    %v883 = vunpack.c.l.b16 %v204
    %v884 = vunpack.c.h.b16 %v204
    %v885 = vunpack.c.l.b16 %v205
    %v886 = vunpack.c.h.b16 %v205
    %v887 = vunpack.c.l.b16 %v206
    %v888 = vunpack.c.h.b16 %v206
    %v889 = vunpack.c.l.b16 %v207
    %v890 = vunpack.c.h.b16 %v207
    %v891 = vunpack.c.l.b16 %v208
    %v892 = vunpack.c.h.b16 %v208
    %v893 = vunpack.c.l.b16 %v209
    %v894 = vunpack.c.h.b16 %v209
    %v895 = vunpack.c.l.b16 %v210
    %v896 = vunpack.c.h.b16 %v210
    %v897 = vunpack.c.l.b16 %v211
    %v898 = vunpack.c.h.b16 %v211
    %v899 = vunpack.c.l.b16 %v212
    %v900 = vunpack.c.h.b16 %v212
    %v901 = vunpack.c.l.b16 %v213
    %v902 = vunpack.c.h.b16 %v213
    %v903 = vunpack.c.l.b16 %v214
    %v904 = vunpack.c.h.b16 %v214
    %v905 = vunpack.c.l.b16 %v215
    %v906 = vunpack.c.h.b16 %v215
    %v907 = vunpack.c.l.b16 %v216
    %v908 = vunpack.c.h.b16 %v216
    %v909 = vunpack.c.l.b16 %v217
    %v910 = vunpack.c.h.b16 %v217
    %v911 = vunpack.c.l.b16 %v218
    %v912 = vunpack.c.h.b16 %v218
    %v913 = vunpack.c.l.b16 %v219
    %v914 = vunpack.c.h.b16 %v219
    %v915 = vunpack.c.l.b16 %v220
    %v916 = vunpack.c.h.b16 %v220
    %v917 = vunpack.c.l.b16 %v221
    %v918 = vunpack.c.h.b16 %v221
    %v919 = vunpack.c.l.b16 %v222
    %v920 = vunpack.c.h.b16 %v222
    %v921 = vunpack.c.l.b16 %v223
    %v922 = vunpack.c.h.b16 %v223
    %v923 = vunpack.c.l.b16 %v224
    %v924 = vunpack.c.h.b16 %v224
    %v925 = vunpack.c.l.b16 %v225
    %v926 = vunpack.c.h.b16 %v225
    %v927 = vunpack.c.l.b16 %v226
    %v928 = vunpack.c.h.b16 %v226
    %v929 = vunpack.c.l.b16 %v227
    %v930 = vunpack.c.h.b16 %v227
    %v931 = vunpack.c.l.b16 %v228
    %v932 = vunpack.c.h.b16 %v228
    %v933 = vunpack.c.l.b16 %v229
    %v934 = vunpack.c.h.b16 %v229
    %v935 = vunpack.c.l.b16 %v230
    %v936 = vunpack.c.h.b16 %v230
    %v937 = vunpack.c.l.b16 %v231
    %v938 = vunpack.c.h.b16 %v231
    %v939 = vunpack.c.l.b16 %v232
    %v940 = vunpack.c.h.b16 %v232
    %v941 = vunpack.c.l.b16 %v233
    %v942 = vunpack.c.h.b16 %v233
    %v943 = vunpack.c.l.b16 %v234
    %v944 = vunpack.c.h.b16 %v234
    %v945 = vunpack.c.l.b16 %v235
    %v946 = vunpack.c.h.b16 %v235
    %v947 = vunpack.c.l.b16 %v236
    %v948 = vunpack.c.h.b16 %v236
    %v949 = vunpack.c.l.b16 %v237
    %v950 = vunpack.c.h.b16 %v237
    %v951 = vunpack.c.l.b16 %v238
    %v952 = vunpack.c.h.b16 %v238
    %v953 = vunpack.c.l.b16 %v239
    %v954 = vunpack.c.h.b16 %v239
    %v955 = vunpack.c.l.b16 %v240
    %v956 = vunpack.c.h.b16 %v240
    %v957 = vunpack.c.l.b16 %v241
    %v958 = vunpack.c.h.b16 %v241
    %v959 = vunpack.c.l.b16 %v242
    %v960 = vunpack.c.h.b16 %v242
    %v961 = vunpack.c.l.b16 %v243
    %v962 = vunpack.c.h.b16 %v243
    %v963 = vunpack.c.l.b16 %v244
    %v964 = vunpack.c.h.b16 %v244
    %v965 = vunpack.c.l.b16 %v245
    %v966 = vunpack.c.h.b16 %v245
    %v967 = vunpack.c.l.b16 %v246
    %v968 = vunpack.c.h.b16 %v246
    %v969 = vunpack.c.l.b16 %v247
    %v970 = vunpack.c.h.b16 %v247
    %v971 = vunpack.c.l.b16 %v248
    %v972 = vunpack.c.h.b16 %v248
    %v973 = vunpack.c.l.b16 %v249
    %v974 = vunpack.c.h.b16 %v249
    %v975 = vunpack.c.l.b16 %v250
    %v976 = vunpack.c.h.b16 %v250
    %v977 = vunpack.c.l.b16 %v251
    %v978 = vunpack.c.h.b16 %v251
    %v979 = vunpack.c.l.b16 %v252
    %v980 = vunpack.c.h.b16 %v252
    %v981 = vunpack.c.l.b16 %v253
    %v982 = vunpack.c.h.b16 %v253
    %v983 = vunpack.c.l.b16 %v254
    %v984 = vunpack.c.h.b16 %v254
    %v985 = vunpack.c.l.b16 %v255
    %v986 = vunpack.c.h.b16 %v255
    %v987 = vunpack.c.l.b16 %v256
    %v988 = vunpack.c.h.b16 %v256
    %v989 = vunpack.c.l.b16 %v257
    %v990 = vunpack.c.h.b16 %v257
    %v991 = vunpack.c.l.b16 %v258
    %v992 = vunpack.c.h.b16 %v258
    %v993 = vunpack.c.l.b16 %v259
    %v994 = vunpack.c.h.b16 %v259
    %v995 = vunpack.c.l.b16 %v260
    %v996 = vunpack.c.h.b16 %v260
    %v997 = vunpack.c.l.b16 %v261
    %v998 = vunpack.c.h.b16 %v261
    %v999 = vunpack.c.l.b16 %v262
    %v1000 = vunpack.c.h.b16 %v262
    %v1001 = vunpack.c.l.b16 %v263
    %v1002 = vunpack.c.h.b16 %v263
    %v1003 = vunpack.c.l.b16 %v264
    %v1004 = vunpack.c.h.b16 %v264
    %v1005 = vunpack.c.l.b16 %v265
    %v1006 = vunpack.c.h.b16 %v265
    %v1007 = vunpack.c.l.b16 %v266
    %v1008 = vunpack.c.h.b16 %v266
    %v1009 = vunpack.c.l.b16 %v267
    %v1010 = vunpack.c.h.b16 %v267
    %v1011 = vunpack.c.l.b16 %v268
    %v1012 = vunpack.c.h.b16 %v268
    %v1013 = vunpack.c.l.b16 %v269
    %v1014 = vunpack.c.h.b16 %v269
    %v1015 = vunpack.c.l.b16 %v270
    %v1016 = vunpack.c.h.b16 %v270
    %v1017 = vunpack.c.l.b16 %v271
    %v1018 = vunpack.c.h.b16 %v271
    %v1019 = vunpack.c.l.b16 %v272
    %v1020 = vunpack.c.h.b16 %v272
    %v1021 = vunpack.c.l.b16 %v273
    %v1022 = vunpack.c.h.b16 %v273
    %v1023 = vunpack.c.l.b16 %v274
    %v1024 = vunpack.c.h.b16 %v274
    %v1025 = vunpack.c.l.b16 %v275
    %v1026 = vunpack.c.h.b16 %v275
    %v1027 = vunpack.c.l.b16 %v276
    %v1028 = vunpack.c.h.b16 %v276
    %v1029 = vunpack.c.l.b16 %v277
    %v1030 = vunpack.c.h.b16 %v277
    %v1031 = vunpack.c.l.b16 %v278
    %v1032 = vunpack.c.h.b16 %v278
    %v1033 = vunpack.c.l.b16 %v279
    %v1034 = vunpack.c.h.b16 %v279
    %v1035 = vunpack.c.l.b16 %v280
    %v1036 = vunpack.c.h.b16 %v280
    %v1037 = vunpack.c.l.b16 %v281
    %v1038 = vunpack.c.h.b16 %v281
    %v1039 = vunpack.c.l.b16 %v282
    %v1040 = vunpack.c.h.b16 %v282
    %v1041 = vunpack.c.l.b16 %v283
    %v1042 = vunpack.c.h.b16 %v283
    %v1043 = vunpack.c.l.b16 %v284
    %v1044 = vunpack.c.h.b16 %v284
    %v1045 = vunpack.c.l.b16 %v285
    %v1046 = vunpack.c.h.b16 %v285
    %v1047 = vunpack.c.l.b16 %v286
    %v1048 = vunpack.c.h.b16 %v286
    %v1049 = vunpack.c.l.b16 %v287
    %v1050 = vunpack.c.h.b16 %v287
    %v1051 = vunpack.c.l.b16 %v288
    %v1052 = vunpack.c.h.b16 %v288
    %v1053 = vunpack.c.l.b16 %v289
    %v1054 = vunpack.c.h.b16 %v289
    %v1055 = vunpack.c.l.b16 %v290
    %v1056 = vunpack.c.h.b16 %v290
    %v1057 = vunpack.c.l.b16 %v291
    %v1058 = vunpack.c.h.b16 %v291
    %v1059 = vunpack.c.l.b16 %v292
    %v1060 = vunpack.c.h.b16 %v292
    %v1061 = vunpack.c.l.b16 %v293
    %v1062 = vunpack.c.h.b16 %v293
    %v1063 = vunpack.c.l.b16 %v294
    %v1064 = vunpack.c.h.b16 %v294
    %v1065 = vunpack.c.l.b16 %v295
    %v1066 = vunpack.c.h.b16 %v295
    %v1067 = vunpack.c.l.b16 %v296
    %v1068 = vunpack.c.h.b16 %v296
    %v1069 = vunpack.c.l.b16 %v297
    %v1070 = vunpack.c.h.b16 %v297
    %v1071 = vunpack.c.l.b16 %v298
    %v1072 = vunpack.c.h.b16 %v298
    %v1073 = vunpack.c.l.b16 %v299
    %v1074 = vunpack.c.h.b16 %v299
    %v1075 = vunpack.c.l.b16 %v300
    %v1076 = vunpack.c.h.b16 %v300
    %v1077 = vunpack.c.l.b16 %v301
    %v1078 = vunpack.c.h.b16 %v301
    %v1079 = vunpack.c.l.b16 %v302
    %v1080 = vunpack.c.h.b16 %v302
    %v1081 = vunpack.c.l.b16 %v303
    %v1082 = vunpack.c.h.b16 %v303
    %v1083 = vunpack.c.l.b16 %v304
    %v1084 = vunpack.c.h.b16 %v304
    %v1085 = vunpack.c.l.b16 %v305
    %v1086 = vunpack.c.h.b16 %v305
    %v1087 = vunpack.c.l.b16 %v306
    %v1088 = vunpack.c.h.b16 %v306
    %v1089 = vunpack.c.l.b16 %v307
    %v1090 = vunpack.c.h.b16 %v307
    %v1091 = vunpack.c.l.b16 %v308
    %v1092 = vunpack.c.h.b16 %v308
    %v1093 = vunpack.c.l.b16 %v309
    %v1094 = vunpack.c.h.b16 %v309
    %v1095 = vunpack.c.l.b16 %v310
    %v1096 = vunpack.c.h.b16 %v310
    %v1097 = vunpack.c.l.b16 %v311
    %v1098 = vunpack.c.h.b16 %v311
    %v1099 = vunpack.c.l.b16 %v312
    %v1100 = vunpack.c.h.b16 %v312
    %v1101 = vunpack.c.l.b16 %v313
    %v1102 = vunpack.c.h.b16 %v313
    %v1103 = vunpack.c.l.b16 %v314
    %v1104 = vunpack.c.h.b16 %v314
    %v1105 = vunpack.c.l.b16 %v315
    %v1106 = vunpack.c.h.b16 %v315
    %v1107 = vunpack.c.l.b16 %v316
    %v1108 = vunpack.c.h.b16 %v316
    %v1109 = vunpack.c.l.b16 %v317
    %v1110 = vunpack.c.h.b16 %v317
    %v1111 = vunpack.c.l.b16 %v318
    %v1112 = vunpack.c.h.b16 %v318
    %v1113 = vunpack.c.l.b16 %v319
    %v1114 = vunpack.c.h.b16 %v319
    %v1115 = vunpack.c.l.b16 %v320
    %v1116 = vunpack.c.h.b16 %v320
    %v1117 = vunpack.c.l.b16 %v321
    %v1118 = vunpack.c.h.b16 %v321
    %v1119 = vunpack.c.l.b16 %v322
    %v1120 = vunpack.c.h.b16 %v322
    %v1121 = vunpack.c.l.b16 %v323
    %v1122 = vunpack.c.h.b16 %v323
    %v1123 = vunpack.c.l.b16 %v324
    %v1124 = vunpack.c.h.b16 %v324
    %v1125 = vunpack.c.l.b16 %v325
    %v1126 = vunpack.c.h.b16 %v325
    %v1127 = vunpack.c.l.b16 %v326
    %v1128 = vunpack.c.h.b16 %v326
    %v1129 = vunpack.c.l.b16 %v327
    %v1130 = vunpack.c.h.b16 %v327
    %v1131 = vunpack.c.l.b16 %v328
    %v1132 = vunpack.c.h.b16 %v328
    %v1133 = vunpack.c.l.b16 %v329
    %v1134 = vunpack.c.h.b16 %v329
    %v1135 = vunpack.c.l.b16 %v330
    %v1136 = vunpack.c.h.b16 %v330
    %v1137 = vunpack.c.l.b16 %v331
    %v1138 = vunpack.c.h.b16 %v331
    %v1139 = vunpack.c.l.b16 %v332
    %v1140 = vunpack.c.h.b16 %v332
    %v1141 = vunpack.c.l.b16 %v333
    %v1142 = vunpack.c.h.b16 %v333
    %v1143 = vunpack.c.l.b16 %v334
    %v1144 = vunpack.c.h.b16 %v334
    %v1145 = vunpack.c.l.b16 %v335
    %v1146 = vunpack.c.h.b16 %v335
    %v1147 = vunpack.c.l.b16 %v336
    %v1148 = vunpack.c.h.b16 %v336
    %v1149 = vunpack.c.l.b16 %v337
    %v1150 = vunpack.c.h.b16 %v337
    %v1151 = vunpack.c.l.b16 %v338
    %v1152 = vunpack.c.h.b16 %v338
    %v1153 = vunpack.c.l.b16 %v339
    %v1154 = vunpack.c.h.b16 %v339
    %v1155 = vunpack.c.l.b16 %v340
    %v1156 = vunpack.c.h.b16 %v340
    %v1157 = vunpack.c.l.b16 %v341
    %v1158 = vunpack.c.h.b16 %v341
    %v1159 = vunpack.c.l.b16 %v342
    %v1160 = vunpack.c.h.b16 %v342
    %v1161 = vunpack.c.l.b16 %v343
    %v1162 = vunpack.c.h.b16 %v343
    %v1163 = vunpack.c.l.b16 %v344
    %v1164 = vunpack.c.h.b16 %v344
    %v1165 = vunpack.c.l.b16 %v345
    %v1166 = vunpack.c.h.b16 %v345
    %v1167 = vunpack.c.l.b16 %v346
    %v1168 = vunpack.c.h.b16 %v346
    %v1169 = vunpack.c.l.b16 %v347
    %v1170 = vunpack.c.h.b16 %v347
    %v1171 = vunpack.c.l.b16 %v348
    %v1172 = vunpack.c.h.b16 %v348
    %v1173 = vunpack.c.l.b16 %v349
    %v1174 = vunpack.c.h.b16 %v349
    %v1175 = vunpack.c.l.b16 %v350
    %v1176 = vunpack.c.h.b16 %v350
    %v1177 = vunpack.c.l.b16 %v351
    %v1178 = vunpack.c.h.b16 %v351
    %v1179 = vunpack.c.l.b16 %v352
    %v1180 = vunpack.c.h.b16 %v352
    %v1181 = vunpack.c.l.b16 %v353
    %v1182 = vunpack.c.h.b16 %v353
    %v1183 = vunpack.c.l.b16 %v354
    %v1184 = vunpack.c.h.b16 %v354
    %v1185 = vunpack.c.l.b16 %v355
    %v1186 = vunpack.c.h.b16 %v355
    %v1187 = vunpack.c.l.b16 %v356
    %v1188 = vunpack.c.h.b16 %v356
    %v1189 = vunpack.c.l.b16 %v357
    %v1190 = vunpack.c.h.b16 %v357
    %v1191 = vunpack.c.l.b16 %v358
    %v1192 = vunpack.c.h.b16 %v358
    %v1193 = vunpack.c.l.b16 %v359
    %v1194 = vunpack.c.h.b16 %v359
    %v1195 = vunpack.c.l.b16 %v360
    %v1196 = vunpack.c.h.b16 %v360
    %v1197 = vunpack.c.l.b16 %v361
    %v1198 = vunpack.c.h.b16 %v361
    %v1199 = vunpack.c.l.b16 %v362
    %v1200 = vunpack.c.h.b16 %v362
    %v1201 = vunpack.c.l.b16 %v363
    %v1202 = vunpack.c.h.b16 %v363
    %v1203 = vunpack.c.l.b16 %v364
    %v1204 = vunpack.c.h.b16 %v364
    %v1205 = vunpack.c.l.b16 %v365
    %v1206 = vunpack.c.h.b16 %v365
    %v1207 = vunpack.c.l.b16 %v366
    %v1208 = vunpack.c.h.b16 %v366
    %v1209 = vunpack.c.l.b16 %v367
    %v1210 = vunpack.c.h.b16 %v367
    %v1211 = vunpack.c.l.b16 %v368
    %v1212 = vunpack.c.h.b16 %v368
    %v1213 = vunpack.c.l.b16 %v369
    %v1214 = vunpack.c.h.b16 %v369
    %v1215 = vunpack.c.l.b16 %v370
    %v1216 = vunpack.c.h.b16 %v370
    %v1217 = vunpack.c.l.b16 %v371
    %v1218 = vunpack.c.h.b16 %v371
    %v1219 = vunpack.c.l.b16 %v372
    %v1220 = vunpack.c.h.b16 %v372
    %v1221 = vunpack.c.l.b16 %v373
    %v1222 = vunpack.c.h.b16 %v373
    %v1223 = vunpack.c.l.b16 %v374
    %v1224 = vunpack.c.h.b16 %v374
    %v1225 = vunpack.c.l.b16 %v375
    %v1226 = vunpack.c.h.b16 %v375
    %v1227 = vunpack.c.l.b16 %v376
    %v1228 = vunpack.c.h.b16 %v376
    %v1229 = vunpack.c.l.b16 %v377
    %v1230 = vunpack.c.h.b16 %v377
    %v1231 = vunpack.c.l.b16 %v378
    %v1232 = vunpack.c.h.b16 %v378
    %v1233 = vunpack.c.l.b16 %v379
    %v1234 = vunpack.c.h.b16 %v379
    %v1235 = vunpack.c.l.b16 %v380
    %v1236 = vunpack.c.h.b16 %v380
    %v1237 = vunpack.c.l.b16 %v381
    %v1238 = vunpack.c.h.b16 %v381
    %v1239 = vunpack.c.l.b16 %v382
    %v1240 = vunpack.c.h.b16 %v382
    %v1241 = vunpack.c.l.b16 %v383
    %v1242 = vunpack.c.h.b16 %v383
    %v1243 = vunpack.c.l.b16 %v384
    %v1244 = vunpack.c.h.b16 %v384
    %v1245 = vunpack.c.l.b16 %v385
    %v1246 = vunpack.c.h.b16 %v385
    %v1247 = vunpack.c.l.b16 %v386
    %v1248 = vunpack.c.h.b16 %v386
    %v1249 = vunpack.c.l.b16 %v387
    %v1250 = vunpack.c.h.b16 %v387
    %v1251 = vunpack.c.l.b16 %v388
    %v1252 = vunpack.c.h.b16 %v388
    %v1253 = vunpack.c.l.b16 %v389
    %v1254 = vunpack.c.h.b16 %v389
    %v1255 = vunpack.c.l.b16 %v390
    %v1256 = vunpack.c.h.b16 %v390
    %v1257 = vunpack.c.l.b16 %v391
    %v1258 = vunpack.c.h.b16 %v391
    %v1259 = vunpack.c.l.b16 %v392
    %v1260 = vunpack.c.h.b16 %v392
    %v1261 = vunpack.c.l.b16 %v393
    %v1262 = vunpack.c.h.b16 %v393
    %v1263 = vunpack.c.l.b16 %v394
    %v1264 = vunpack.c.h.b16 %v394
    %v1265 = vunpack.c.l.b16 %v395
    %v1266 = vunpack.c.h.b16 %v395
    %v1267 = vunpack.c.l.b16 %v396
    %v1268 = vunpack.c.h.b16 %v396
    %v1269 = vunpack.c.l.b16 %v397
    %v1270 = vunpack.c.h.b16 %v397
    %v1271 = vunpack.c.l.b16 %v398
    %v1272 = vunpack.c.h.b16 %v398
    %v1273 = vunpack.c.l.b16 %v399
    %v1274 = vunpack.c.h.b16 %v399
    %v1275 = vunpack.c.l.b16 %v400
    %v1276 = vunpack.c.h.b16 %v400
    %v1277 = vunpack.c.l.b16 %v401
    %v1278 = vunpack.c.h.b16 %v401
    %v1279 = vunpack.c.l.b16 %v402
    %v1280 = vunpack.c.h.b16 %v402
    %v1281 = vunpack.c.l.b16 %v403
    %v1282 = vunpack.c.h.b16 %v403
    %v1283 = vunpack.c.l.b16 %v404
    %v1284 = vunpack.c.h.b16 %v404
    %v1285 = vunpack.c.l.b16 %v405
    %v1286 = vunpack.c.h.b16 %v405
    %v1287 = vunpack.c.l.b16 %v406
    %v1288 = vunpack.c.h.b16 %v406
    %v1289 = vunpack.c.l.b16 %v407
    %v1290 = vunpack.c.h.b16 %v407
    %v1291 = vunpack.c.l.b16 %v408
    %v1292 = vunpack.c.h.b16 %v408
    %v1293 = vunpack.c.l.b16 %v409
    %v1294 = vunpack.c.h.b16 %v409
    %v1295 = vunpack.c.l.b16 %v410
    %v1296 = vunpack.c.h.b16 %v410
    %v1297 = vunpack.c.l.b16 %v411
    %v1298 = vunpack.c.h.b16 %v411
    %v1299 = vunpack.c.l.b16 %v412
    %v1300 = vunpack.c.h.b16 %v412
    %v1301 = vunpack.c.l.b16 %v413
    %v1302 = vunpack.c.h.b16 %v413
    %v1303 = vunpack.c.l.b16 %v414
    %v1304 = vunpack.c.h.b16 %v414
    %v1305 = vunpack.c.l.b16 %v415
    %v1306 = vunpack.c.h.b16 %v415
    %v1307 = vunpack.c.l.b16 %v416
    %v1308 = vunpack.c.h.b16 %v416
    %v1309 = vunpack.c.l.b16 %v417
    %v1310 = vunpack.c.h.b16 %v417
    %v1311 = vunpack.c.l.b16 %v418
    %v1312 = vunpack.c.h.b16 %v418
    %v1313 = vunpack.c.l.b16 %v419
    %v1314 = vunpack.c.h.b16 %v419
    %v1315 = vunpack.c.l.b16 %v420
    %v1316 = vunpack.c.h.b16 %v420
    %v1317 = vpack.c.b16 %v747, %v741
    %v1318 = vpack.c.b16 %v748, %v742
    %v1319 = vpack.c.b16 %v749, %v743
    %v1320 = vpack.c.b16 %v750, %v744
    %v1321 = vpack.c.b16 %v751, %v745
    %v1322 = vpack.c.b16 %v752, %v746
    %v1323 = vpack.c.b16 %v759, %v753
    %v1324 = vpack.c.b16 %v760, %v754
    %v1325 = vpack.c.b16 %v761, %v755
    %v1326 = vpack.c.b16 %v762, %v756
    %v1327 = vpack.c.b16 %v763, %v757
    %v1328 = vpack.c.b16 %v764, %v758
    %v1329 = vpack.c.b16 %v771, %v765
    %v1330 = vpack.c.b16 %v772, %v766
    %v1331 = vpack.c.b16 %v773, %v767
    %v1332 = vpack.c.b16 %v774, %v768
    %v1333 = vpack.c.b16 %v775, %v769
    %v1334 = vpack.c.b16 %v776, %v770
    %v1335 = vpack.c.b16 %v783, %v777
    %v1336 = vpack.c.b16 %v784, %v778
    %v1337 = vpack.c.b16 %v785, %v779
    %v1338 = vpack.c.b16 %v786, %v780
    %v1339 = vpack.c.b16 %v787, %v781
    %v1340 = vpack.c.b16 %v788, %v782
    %v1341 = vpack.c.b16 %v795, %v789
    %v1342 = vpack.c.b16 %v796, %v790
    %v1343 = vpack.c.b16 %v797, %v791
    %v1344 = vpack.c.b16 %v798, %v792
    %v1345 = vpack.c.b16 %v799, %v793
    %v1346 = vpack.c.b16 %v800, %v794
    %v1347 = vpack.c.b16 %v807, %v801
    %v1348 = vpack.c.b16 %v808, %v802
    %v1349 = vpack.c.b16 %v809, %v803
    %v1350 = vpack.c.b16 %v810, %v804
    %v1351 = vpack.c.b16 %v811, %v805
    %v1352 = vpack.c.b16 %v812, %v806
    %v1353 = vpack.c.b16 %v819, %v813
    %v1354 = vpack.c.b16 %v820, %v814
    %v1355 = vpack.c.b16 %v821, %v815
    %v1356 = vpack.c.b16 %v822, %v816
    %v1357 = vpack.c.b16 %v823, %v817
    %v1358 = vpack.c.b16 %v824, %v818
    %v1359 = vpack.c.b16 %v831, %v825
    %v1360 = vpack.c.b16 %v832, %v826
    %v1361 = vpack.c.b16 %v833, %v827
    %v1362 = vpack.c.b16 %v834, %v828
    %v1363 = vpack.c.b16 %v835, %v829
    %v1364 = vpack.c.b16 %v836, %v830
    %v1365 = vpack.c.b16 %v843, %v837
    %v1366 = vpack.c.b16 %v844, %v838
    %v1367 = vpack.c.b16 %v845, %v839
    %v1368 = vpack.c.b16 %v846, %v840
    %v1369 = vpack.c.b16 %v847, %v841
    %v1370 = vpack.c.b16 %v848, %v842
    %v1371 = vpack.c.b16 %v855, %v849
    %v1372 = vpack.c.b16 %v856, %v850
    %v1373 = vpack.c.b16 %v857, %v851
    %v1374 = vpack.c.b16 %v858, %v852
    %v1375 = vpack.c.b16 %v859, %v853
    %v1376 = vpack.c.b16 %v860, %v854
    %v1377 = vpack.c.b16 %v867, %v861
    %v1378 = vpack.c.b16 %v868, %v862
    %v1379 = vpack.c.b16 %v869, %v863
    %v1380 = vpack.c.b16 %v870, %v864
    %v1381 = vpack.c.b16 %v871, %v865
    %v1382 = vpack.c.b16 %v872, %v866
    %v1383 = vpack.c.b16 %v879, %v873
    %v1384 = vpack.c.b16 %v880, %v874
    %v1385 = vpack.c.b16 %v881, %v875
    %v1386 = vpack.c.b16 %v882, %v876
    %v1387 = vpack.c.b16 %v883, %v877
    %v1388 = vpack.c.b16 %v884, %v878
    %v1389 = vpack.c.b16 %v891, %v885
    %v1390 = vpack.c.b16 %v892, %v886
    %v1391 = vpack.c.b16 %v893, %v887
    %v1392 = vpack.c.b16 %v894, %v888
    %v1393 = vpack.c.b16 %v895, %v889
    %v1394 = vpack.c.b16 %v896, %v890
    %v1395 = vpack.c.b16 %v903, %v897
    %v1396 = vpack.c.b16 %v904, %v898
    %v1397 = vpack.c.b16 %v905, %v899
    %v1398 = vpack.c.b16 %v906, %v900
    %v1399 = vpack.c.b16 %v907, %v901
    %v1400 = vpack.c.b16 %v908, %v902
    %v1401 = vpack.c.b16 %v915, %v909
    %v1402 = vpack.c.b16 %v916, %v910
    %v1403 = vpack.c.b16 %v917, %v911
    %v1404 = vpack.c.b16 %v918, %v912
    %v1405 = vpack.c.b16 %v919, %v913
    %v1406 = vpack.c.b16 %v920, %v914
    %v1407 = vpack.c.b16 %v927, %v921
    %v1408 = vpack.c.b16 %v928, %v922
    %v1409 = vpack.c.b16 %v929, %v923
    %v1410 = vpack.c.b16 %v930, %v924
    %v1411 = vpack.c.b16 %v931, %v925
    %v1412 = vpack.c.b16 %v932, %v926
    %v1413 = vpack.c.b16 %v939, %v933
    %v1414 = vpack.c.b16 %v940, %v934
    %v1415 = vpack.c.b16 %v941, %v935
    %v1416 = vpack.c.b16 %v942, %v936
    %v1417 = vpack.c.b16 %v943, %v937
    %v1418 = vpack.c.b16 %v944, %v938
    %v1419 = vpack.c.b16 %v951, %v945
    %v1420 = vpack.c.b16 %v952, %v946
    %v1421 = vpack.c.b16 %v953, %v947
    %v1422 = vpack.c.b16 %v954, %v948
    %v1423 = vpack.c.b16 %v955, %v949
    %v1424 = vpack.c.b16 %v956, %v950
    %v1425 = vpack.c.b16 %v963, %v957
    %v1426 = vpack.c.b16 %v964, %v958
    %v1427 = vpack.c.b16 %v965, %v959
    %v1428 = vpack.c.b16 %v966, %v960
    %v1429 = vpack.c.b16 %v967, %v961
    %v1430 = vpack.c.b16 %v968, %v962
    %v1431 = vpack.c.b16 %v975, %v969
    %v1432 = vpack.c.b16 %v976, %v970
    %v1433 = vpack.c.b16 %v977, %v971
    %v1434 = vpack.c.b16 %v978, %v972
    %v1435 = vpack.c.b16 %v979, %v973
    %v1436 = vpack.c.b16 %v980, %v974
    %v1437 = vpack.c.b16 %v987, %v981
    %v1438 = vpack.c.b16 %v988, %v982
    %v1439 = vpack.c.b16 %v989, %v983
    %v1440 = vpack.c.b16 %v990, %v984
    %v1441 = vpack.c.b16 %v991, %v985
    %v1442 = vpack.c.b16 %v992, %v986
    %v1443 = vpack.c.b16 %v999, %v993
    %v1444 = vpack.c.b16 %v1000, %v994
    %v1445 = vpack.c.b16 %v1001, %v995
    %v1446 = vpack.c.b16 %v1002, %v996
    %v1447 = vpack.c.b16 %v1003, %v997
    %v1448 = vpack.c.b16 %v1004, %v998
    %v1449 = vpack.c.b16 %v1011, %v1005
    %v1450 = vpack.c.b16 %v1012, %v1006
    %v1451 = vpack.c.b16 %v1013, %v1007
    %v1452 = vpack.c.b16 %v1014, %v1008
    %v1453 = vpack.c.b16 %v1015, %v1009
    %v1454 = vpack.c.b16 %v1016, %v1010
    %v1455 = vpack.c.b16 %v1023, %v1017
    %v1456 = vpack.c.b16 %v1024, %v1018
    %v1457 = vpack.c.b16 %v1025, %v1019
    %v1458 = vpack.c.b16 %v1026, %v1020
    %v1459 = vpack.c.b16 %v1027, %v1021
    %v1460 = vpack.c.b16 %v1028, %v1022
    %v1461 = vpack.c.b16 %v1035, %v1029
    %v1462 = vpack.c.b16 %v1036, %v1030
    %v1463 = vpack.c.b16 %v1037, %v1031
    %v1464 = vpack.c.b16 %v1038, %v1032
    %v1465 = vpack.c.b16 %v1039, %v1033
    %v1466 = vpack.c.b16 %v1040, %v1034
    %v1467 = vpack.c.b16 %v1047, %v1041
    %v1468 = vpack.c.b16 %v1048, %v1042
    %v1469 = vpack.c.b16 %v1049, %v1043
    %v1470 = vpack.c.b16 %v1050, %v1044
    %v1471 = vpack.c.b16 %v1051, %v1045
    %v1472 = vpack.c.b16 %v1052, %v1046
    %v1473 = vpack.c.b16 %v1059, %v1053
    %v1474 = vpack.c.b16 %v1060, %v1054
    %v1475 = vpack.c.b16 %v1061, %v1055
    %v1476 = vpack.c.b16 %v1062, %v1056
    %v1477 = vpack.c.b16 %v1063, %v1057
    %v1478 = vpack.c.b16 %v1064, %v1058
    %v1479 = vpack.c.b16 %v1071, %v1065
    %v1480 = vpack.c.b16 %v1072, %v1066
    %v1481 = vpack.c.b16 %v1073, %v1067
    %v1482 = vpack.c.b16 %v1074, %v1068
    %v1483 = vpack.c.b16 %v1075, %v1069
    %v1484 = vpack.c.b16 %v1076, %v1070
    %v1485 = vpack.c.b16 %v1083, %v1077
    %v1486 = vpack.c.b16 %v1084, %v1078
    %v1487 = vpack.c.b16 %v1085, %v1079
    %v1488 = vpack.c.b16 %v1086, %v1080
    %v1489 = vpack.c.b16 %v1087, %v1081
    %v1490 = vpack.c.b16 %v1088, %v1082
    %v1491 = vpack.c.b16 %v1095, %v1089
    %v1492 = vpack.c.b16 %v1096, %v1090
    %v1493 = vpack.c.b16 %v1097, %v1091
    %v1494 = vpack.c.b16 %v1098, %v1092
    %v1495 = vpack.c.b16 %v1099, %v1093
    %v1496 = vpack.c.b16 %v1100, %v1094
    %v1497 = vpack.c.b16 %v1107, %v1101
    %v1498 = vpack.c.b16 %v1108, %v1102
    %v1499 = vpack.c.b16 %v1109, %v1103
    %v1500 = vpack.c.b16 %v1110, %v1104
    %v1501 = vpack.c.b16 %v1111, %v1105
    %v1502 = vpack.c.b16 %v1112, %v1106
    %v1503 = vpack.c.b16 %v1119, %v1113
    %v1504 = vpack.c.b16 %v1120, %v1114
    %v1505 = vpack.c.b16 %v1121, %v1115
    %v1506 = vpack.c.b16 %v1122, %v1116
    %v1507 = vpack.c.b16 %v1123, %v1117
    %v1508 = vpack.c.b16 %v1124, %v1118
    %v1509 = vpack.c.b16 %v1131, %v1125
    %v1510 = vpack.c.b16 %v1132, %v1126
    %v1511 = vpack.c.b16 %v1133, %v1127
    %v1512 = vpack.c.b16 %v1134, %v1128
    %v1513 = vpack.c.b16 %v1135, %v1129
    %v1514 = vpack.c.b16 %v1136, %v1130
    %v1515 = vpack.c.b16 %v1143, %v1137
    %v1516 = vpack.c.b16 %v1144, %v1138
    %v1517 = vpack.c.b16 %v1145, %v1139
    %v1518 = vpack.c.b16 %v1146, %v1140
    %v1519 = vpack.c.b16 %v1147, %v1141
    %v1520 = vpack.c.b16 %v1148, %v1142
    %v1521 = vpack.c.b16 %v1155, %v1149
    %v1522 = vpack.c.b16 %v1156, %v1150
    %v1523 = vpack.c.b16 %v1157, %v1151
    %v1524 = vpack.c.b16 %v1158, %v1152
    %v1525 = vpack.c.b16 %v1159, %v1153
    %v1526 = vpack.c.b16 %v1160, %v1154
    %v1527 = vpack.c.b16 %v1167, %v1161
    %v1528 = vpack.c.b16 %v1168, %v1162
    %v1529 = vpack.c.b16 %v1169, %v1163
    %v1530 = vpack.c.b16 %v1170, %v1164
    %v1531 = vpack.c.b16 %v1171, %v1165
    %v1532 = vpack.c.b16 %v1172, %v1166
    %v1533 = vpack.c.b16 %v1179, %v1173
    %v1534 = vpack.c.b16 %v1180, %v1174
    %v1535 = vpack.c.b16 %v1181, %v1175
    %v1536 = vpack.c.b16 %v1182, %v1176
    %v1537 = vpack.c.b16 %v1183, %v1177
    %v1538 = vpack.c.b16 %v1184, %v1178
    %v1539 = vpack.c.b16 %v1191, %v1185
    %v1540 = vpack.c.b16 %v1192, %v1186
    %v1541 = vpack.c.b16 %v1193, %v1187
    %v1542 = vpack.c.b16 %v1194, %v1188
    %v1543 = vpack.c.b16 %v1195, %v1189
    %v1544 = vpack.c.b16 %v1196, %v1190
    %v1545 = vpack.c.b16 %v1203, %v1197
    %v1546 = vpack.c.b16 %v1204, %v1198
    %v1547 = vpack.c.b16 %v1205, %v1199
    %v1548 = vpack.c.b16 %v1206, %v1200
    %v1549 = vpack.c.b16 %v1207, %v1201
    %v1550 = vpack.c.b16 %v1208, %v1202
    %v1551 = vpack.c.b16 %v1215, %v1209
    %v1552 = vpack.c.b16 %v1216, %v1210
    %v1553 = vpack.c.b16 %v1217, %v1211
    %v1554 = vpack.c.b16 %v1218, %v1212
    %v1555 = vpack.c.b16 %v1219, %v1213
    %v1556 = vpack.c.b16 %v1220, %v1214
    %v1557 = vpack.c.b16 %v1227, %v1221
    %v1558 = vpack.c.b16 %v1228, %v1222
    %v1559 = vpack.c.b16 %v1229, %v1223
    %v1560 = vpack.c.b16 %v1230, %v1224
    %v1561 = vpack.c.b16 %v1231, %v1225
    %v1562 = vpack.c.b16 %v1232, %v1226
    %v1563 = vpack.c.b16 %v1239, %v1233
    %v1564 = vpack.c.b16 %v1240, %v1234
    %v1565 = vpack.c.b16 %v1241, %v1235
    %v1566 = vpack.c.b16 %v1242, %v1236
    %v1567 = vpack.c.b16 %v1243, %v1237
    %v1568 = vpack.c.b16 %v1244, %v1238
    %v1569 = vpack.c.b16 %v1251, %v1245
    %v1570 = vpack.c.b16 %v1252, %v1246
    %v1571 = vpack.c.b16 %v1253, %v1247
    %v1572 = vpack.c.b16 %v1254, %v1248
    %v1573 = vpack.c.b16 %v1255, %v1249
    %v1574 = vpack.c.b16 %v1256, %v1250
    %v1575 = vpack.c.b16 %v1263, %v1257
    %v1576 = vpack.c.b16 %v1264, %v1258
    %v1577 = vpack.c.b16 %v1265, %v1259
    %v1578 = vpack.c.b16 %v1266, %v1260
    %v1579 = vpack.c.b16 %v1267, %v1261
    %v1580 = vpack.c.b16 %v1268, %v1262
    %v1581 = vpack.c.b16 %v1275, %v1269
    %v1582 = vpack.c.b16 %v1276, %v1270
    %v1583 = vpack.c.b16 %v1277, %v1271
    %v1584 = vpack.c.b16 %v1278, %v1272
    %v1585 = vpack.c.b16 %v1279, %v1273
    %v1586 = vpack.c.b16 %v1280, %v1274
    %v1587 = vpack.c.b16 %v1287, %v1281
    %v1588 = vpack.c.b16 %v1288, %v1282
    %v1589 = vpack.c.b16 %v1289, %v1283
    %v1590 = vpack.c.b16 %v1290, %v1284
    %v1591 = vpack.c.b16 %v1291, %v1285
    %v1592 = vpack.c.b16 %v1292, %v1286
    %v1593 = vpack.c.b16 %v1299, %v1293
    %v1594 = vpack.c.b16 %v1300, %v1294
    %v1595 = vpack.c.b16 %v1301, %v1295
    %v1596 = vpack.c.b16 %v1302, %v1296
    %v1597 = vpack.c.b16 %v1303, %v1297
    %v1598 = vpack.c.b16 %v1304, %v1298
    %v1599 = vpack.c.b16 %v1311, %v1305
    %v1600 = vpack.c.b16 %v1312, %v1306
    %v1601 = vpack.c.b16 %v1313, %v1307
    %v1602 = vpack.c.b16 %v1314, %v1308
    %v1603 = vpack.c.b16 %v1315, %v1309
    %v1604 = vpack.c.b16 %v1316, %v1310
    %1893 = vmatprep.subr.bf16.mxu0 %v1318
    %1894 = vmatpush1.bf16.msra.mxu0 %v1317
    %1895 = vmatprep.subr.bf16.mxu0 %v1324
    %1896 = vmatpush1.bf16.msra.mxu0 %v1323
    %1897 = vmatprep.subr.bf16.mxu0 %v1330
    %1898 = vmatpush1.bf16.msra.mxu0 %v1329
    %1899 = vmatprep.subr.bf16.mxu0 %v1336
    %1900 = vmatpush1.bf16.msra.mxu0 %v1335
    %1901 = vmatprep.subr.bf16.mxu0 %v1342
    %1902 = vmatpush1.bf16.msra.mxu0 %v1341
    %1903 = vmatprep.subr.bf16.mxu0 %v1348
    %1904 = vmatpush1.bf16.msra.mxu0 %v1347
    %1905 = vmatprep.subr.bf16.mxu0 %v1354
    %1906 = vmatpush1.bf16.msra.mxu0 %v1353
    %1907 = vmatprep.subr.bf16.mxu0 %v1360
    %1908 = vmatpush1.bf16.msra.mxu0 %v1359
    %1909 = vmatprep.subr.bf16.mxu0 %v1366
    %1910 = vmatpush1.bf16.msra.mxu0 %v1365
    %1911 = vmatprep.subr.bf16.mxu0 %v1372
    %1912 = vmatpush1.bf16.msra.mxu0 %v1371
    %1913 = vmatprep.subr.bf16.mxu0 %v1378
    %1914 = vmatpush1.bf16.msra.mxu0 %v1377
    %1915 = vmatprep.subr.bf16.mxu0 %v1384
    %1916 = vmatpush1.bf16.msra.mxu0 %v1383
    %1917 = vmatprep.subr.bf16.mxu0 %v1390
    %1918 = vmatpush1.bf16.msra.mxu0 %v1389
    %1919 = vmatprep.subr.bf16.mxu0 %v1396
    %1920 = vmatpush1.bf16.msra.mxu0 %v1395
    %1921 = vmatprep.subr.bf16.mxu0 %v1402
    %1922 = vmatpush1.bf16.msra.mxu0 %v1401
    %1923 = vmatprep.subr.bf16.mxu0 %v1408
    %1924 = vmatpush1.bf16.msra.mxu0 %v1407
    %1925 = vmatprep.mubr.bf16.mxu0 %v128
    %1926 = vmatmul.mubr.bf16.gmra.mrb[0].mxu0 %v127
    %v1927 = vpop.f32.mrb[0].mxu0
    %v1928 = vadd.f32 %v426, %v1927
    %v1929 = vpop.f32.mrb[0].mxu0
    %v1930 = vadd.f32 %v430, %v1929
    %v1931 = vpop.f32.mrb[0].mxu0
    %v1932 = vpop.f32.mrb[0].mxu0
    %1933 = vdwg.mxu0
    %1934 = vmatprep.subr.bf16.mxu0 %v1414
    %1935 = vmatpush1.bf16.msra.mxu0 %v1413
    %1936 = vmatprep.subr.bf16.mxu0 %v1420
    %1937 = vmatpush1.bf16.msra.mxu0 %v1419
    %1938 = vmatprep.subr.bf16.mxu0 %v1426
    %1939 = vmatpush1.bf16.msra.mxu0 %v1425
    %1940 = vmatprep.subr.bf16.mxu0 %v1432
    %1941 = vmatpush1.bf16.msra.mxu0 %v1431
    %1942 = vmatprep.subr.bf16.mxu0 %v1438
    %1943 = vmatpush1.bf16.msra.mxu0 %v1437
    %1944 = vmatprep.subr.bf16.mxu0 %v1444
    %1945 = vmatpush1.bf16.msra.mxu0 %v1443
    %1946 = vmatprep.subr.bf16.mxu0 %v1450
    %1947 = vmatpush1.bf16.msra.mxu0 %v1449
    %1948 = vmatprep.subr.bf16.mxu0 %v1456
    %1949 = vmatpush1.bf16.msra.mxu0 %v1455
    %1950 = vmatprep.subr.bf16.mxu0 %v1462
    %1951 = vmatpush1.bf16.msra.mxu0 %v1461
    %1952 = vmatprep.subr.bf16.mxu0 %v1468
    %1953 = vmatpush1.bf16.msra.mxu0 %v1467
    %1954 = vmatprep.subr.bf16.mxu0 %v1474
    %1955 = vmatpush1.bf16.msra.mxu0 %v1473
    %1956 = vmatprep.subr.bf16.mxu0 %v1480
    %1957 = vmatpush1.bf16.msra.mxu0 %v1479
    %1958 = vmatprep.subr.bf16.mxu0 %v1486
    %1959 = vmatpush1.bf16.msra.mxu0 %v1485
    %1960 = vmatprep.subr.bf16.mxu0 %v1492
    %1961 = vmatpush1.bf16.msra.mxu0 %v1491
    %1962 = vmatprep.subr.bf16.mxu0 %v1498
    %1963 = vmatpush1.bf16.msra.mxu0 %v1497
    %1964 = vmatprep.subr.bf16.mxu0 %v1504
    %1965 = vmatpush1.bf16.msra.mxu0 %v1503
    %1966 = vmatprep.mubr.bf16.mxu0 %v130
    %1967 = vmatmul.mubr.bf16.gmra.mrb[0].mxu0 %v129
    %v1968 = vpop.f32.mrb[0].mxu0
    %v1969 = vadd.f32 %v1928, %v1968
    %v1970 = vpop.f32.mrb[0].mxu0
    %v1971 = vadd.f32 %v1930, %v1970
    %v1972 = vpop.f32.mrb[0].mxu0
    %v1973 = vpop.f32.mrb[0].mxu0
    %1974 = vdwg.mxu0
    %1975 = vmatprep.subr.bf16.mxu0 %v1510
    %1976 = vmatpush1.bf16.msra.mxu0 %v1509
    %1977 = vmatprep.subr.bf16.mxu0 %v1516
    %1978 = vmatpush1.bf16.msra.mxu0 %v1515
    %1979 = vmatprep.subr.bf16.mxu0 %v1522
    %1980 = vmatpush1.bf16.msra.mxu0 %v1521
    %1981 = vmatprep.subr.bf16.mxu0 %v1528
    %1982 = vmatpush1.bf16.msra.mxu0 %v1527
    %1983 = vmatprep.subr.bf16.mxu0 %v1534
    %1984 = vmatpush1.bf16.msra.mxu0 %v1533
    %1985 = vmatprep.subr.bf16.mxu0 %v1540
    %1986 = vmatpush1.bf16.msra.mxu0 %v1539
    %1987 = vmatprep.subr.bf16.mxu0 %v1546
    %1988 = vmatpush1.bf16.msra.mxu0 %v1545
    %1989 = vmatprep.subr.bf16.mxu0 %v1552
    %1990 = vmatpush1.bf16.msra.mxu0 %v1551
    %1991 = vmatprep.subr.bf16.mxu0 %v1558
    %1992 = vmatpush1.bf16.msra.mxu0 %v1557
    %1993 = vmatprep.subr.bf16.mxu0 %v1564
    %1994 = vmatpush1.bf16.msra.mxu0 %v1563
    %1995 = vmatprep.subr.bf16.mxu0 %v1570
    %1996 = vmatpush1.bf16.msra.mxu0 %v1569
    %1997 = vmatprep.subr.bf16.mxu0 %v1576
    %1998 = vmatpush1.bf16.msra.mxu0 %v1575
    %1999 = vmatprep.subr.bf16.mxu0 %v1582
    %2000 = vmatpush1.bf16.msra.mxu0 %v1581
    %2001 = vmatprep.subr.bf16.mxu0 %v1588
    %2002 = vmatpush1.bf16.msra.mxu0 %v1587
    %2003 = vmatprep.subr.bf16.mxu0 %v1594
    %2004 = vmatpush1.bf16.msra.mxu0 %v1593
    %2005 = vmatprep.subr.bf16.mxu0 %v1600
    %2006 = vmatpush1.bf16.msra.mxu0 %v1599
    %2007 = vmatprep.mubr.bf16.mxu0 %v132
    %2008 = vmatmul.mubr.bf16.gmra.mrb[0].mxu0 %v131
    %v2009 = vpop.f32.mrb[0].mxu0
    %v2010 = vadd.f32 %v1969, %v2009
    %v2011 = vpop.f32.mrb[0].mxu0
    %v2012 = vadd.f32 %v1971, %v2011
    %v2013 = vpop.f32.mrb[0].mxu0
    %v2014 = vpop.f32.mrb[0].mxu0
    %2015 = vdwg.mxu0
    %2016 = vmatprep.subr.bf16.mxu0 %v1320
    %2017 = vmatpush1.bf16.msra.mxu0 %v1319
    %2018 = vmatprep.subr.bf16.mxu0 %v1326
    %2019 = vmatpush1.bf16.msra.mxu0 %v1325
    %2020 = vmatprep.subr.bf16.mxu0 %v1332
    %2021 = vmatpush1.bf16.msra.mxu0 %v1331
    %2022 = vmatprep.subr.bf16.mxu0 %v1338
    %2023 = vmatpush1.bf16.msra.mxu0 %v1337
    %2024 = vmatprep.subr.bf16.mxu0 %v1344
    %2025 = vmatpush1.bf16.msra.mxu0 %v1343
    %2026 = vmatprep.subr.bf16.mxu0 %v1350
    %2027 = vmatpush1.bf16.msra.mxu0 %v1349
    %2028 = vmatprep.subr.bf16.mxu0 %v1356
    %2029 = vmatpush1.bf16.msra.mxu0 %v1355
    %2030 = vmatprep.subr.bf16.mxu0 %v1362
    %2031 = vmatpush1.bf16.msra.mxu0 %v1361
    %2032 = vmatprep.subr.bf16.mxu0 %v1368
    %2033 = vmatpush1.bf16.msra.mxu0 %v1367
    %2034 = vmatprep.subr.bf16.mxu0 %v1374
    %2035 = vmatpush1.bf16.msra.mxu0 %v1373
    %2036 = vmatprep.subr.bf16.mxu0 %v1380
    %2037 = vmatpush1.bf16.msra.mxu0 %v1379
    %2038 = vmatprep.subr.bf16.mxu0 %v1386
    %2039 = vmatpush1.bf16.msra.mxu0 %v1385
    %2040 = vmatprep.subr.bf16.mxu0 %v1392
    %2041 = vmatpush1.bf16.msra.mxu0 %v1391
    %2042 = vmatprep.subr.bf16.mxu0 %v1398
    %2043 = vmatpush1.bf16.msra.mxu0 %v1397
    %2044 = vmatprep.subr.bf16.mxu0 %v1404
    %2045 = vmatpush1.bf16.msra.mxu0 %v1403
    %2046 = vmatprep.subr.bf16.mxu0 %v1410
    %2047 = vmatpush1.bf16.msra.mxu0 %v1409
    %2048 = vmatprep.mubr.bf16.mxu0 %v128
    %2049 = vmatmul.mubr.bf16.gmra.mrb[0].mxu0 %v127
    %v2050 = vpop.f32.mrb[0].mxu0
    %v2051 = vadd.f32 %v434, %v2050
    %v2052 = vpop.f32.mrb[0].mxu0
    %v2053 = vadd.f32 %v438, %v2052
    %v2054 = vpop.f32.mrb[0].mxu0
    %v2055 = vpop.f32.mrb[0].mxu0
    %2056 = vdwg.mxu0
    %2057 = vmatprep.subr.bf16.mxu0 %v1416
    %2058 = vmatpush1.bf16.msra.mxu0 %v1415
    %2059 = vmatprep.subr.bf16.mxu0 %v1422
    %2060 = vmatpush1.bf16.msra.mxu0 %v1421
    %2061 = vmatprep.subr.bf16.mxu0 %v1428
    %2062 = vmatpush1.bf16.msra.mxu0 %v1427
    %2063 = vmatprep.subr.bf16.mxu0 %v1434
    %2064 = vmatpush1.bf16.msra.mxu0 %v1433
    %2065 = vmatprep.subr.bf16.mxu0 %v1440
    %2066 = vmatpush1.bf16.msra.mxu0 %v1439
    %2067 = vmatprep.subr.bf16.mxu0 %v1446
    %2068 = vmatpush1.bf16.msra.mxu0 %v1445
    %2069 = vmatprep.subr.bf16.mxu0 %v1452
    %2070 = vmatpush1.bf16.msra.mxu0 %v1451
    %2071 = vmatprep.subr.bf16.mxu0 %v1458
    %2072 = vmatpush1.bf16.msra.mxu0 %v1457
    %2073 = vmatprep.subr.bf16.mxu0 %v1464
    %2074 = vmatpush1.bf16.msra.mxu0 %v1463
    %2075 = vmatprep.subr.bf16.mxu0 %v1470
    %2076 = vmatpush1.bf16.msra.mxu0 %v1469
    %2077 = vmatprep.subr.bf16.mxu0 %v1476
    %2078 = vmatpush1.bf16.msra.mxu0 %v1475
    %2079 = vmatprep.subr.bf16.mxu0 %v1482
    %2080 = vmatpush1.bf16.msra.mxu0 %v1481
    %2081 = vmatprep.subr.bf16.mxu0 %v1488
    %2082 = vmatpush1.bf16.msra.mxu0 %v1487
    %2083 = vmatprep.subr.bf16.mxu0 %v1494
    %2084 = vmatpush1.bf16.msra.mxu0 %v1493
    %2085 = vmatprep.subr.bf16.mxu0 %v1500
    %2086 = vmatpush1.bf16.msra.mxu0 %v1499
    %2087 = vmatprep.subr.bf16.mxu0 %v1506
    %2088 = vmatpush1.bf16.msra.mxu0 %v1505
    %2089 = vmatprep.mubr.bf16.mxu0 %v130
    %2090 = vmatmul.mubr.bf16.gmra.mrb[0].mxu0 %v129
    %v2091 = vpop.f32.mrb[0].mxu0
    %v2092 = vadd.f32 %v2051, %v2091
    %v2093 = vpop.f32.mrb[0].mxu0
    %v2094 = vadd.f32 %v2053, %v2093
    %v2095 = vpop.f32.mrb[0].mxu0
    %v2096 = vpop.f32.mrb[0].mxu0
    %2097 = vdwg.mxu0
    %2098 = vmatprep.subr.bf16.mxu0 %v1512
    %2099 = vmatpush1.bf16.msra.mxu0 %v1511
    %2100 = vmatprep.subr.bf16.mxu0 %v1518
    %2101 = vmatpush1.bf16.msra.mxu0 %v1517
    %2102 = vmatprep.subr.bf16.mxu0 %v1524
    %2103 = vmatpush1.bf16.msra.mxu0 %v1523
    %2104 = vmatprep.subr.bf16.mxu0 %v1530
    %2105 = vmatpush1.bf16.msra.mxu0 %v1529
    %2106 = vmatprep.subr.bf16.mxu0 %v1536
    %2107 = vmatpush1.bf16.msra.mxu0 %v1535
    %2108 = vmatprep.subr.bf16.mxu0 %v1542
    %2109 = vmatpush1.bf16.msra.mxu0 %v1541
    %2110 = vmatprep.subr.bf16.mxu0 %v1548
    %2111 = vmatpush1.bf16.msra.mxu0 %v1547
    %2112 = vmatprep.subr.bf16.mxu0 %v1554
    %2113 = vmatpush1.bf16.msra.mxu0 %v1553
    %2114 = vmatprep.subr.bf16.mxu0 %v1560
    %2115 = vmatpush1.bf16.msra.mxu0 %v1559
    %2116 = vmatprep.subr.bf16.mxu0 %v1566
    %2117 = vmatpush1.bf16.msra.mxu0 %v1565
    %2118 = vmatprep.subr.bf16.mxu0 %v1572
    %2119 = vmatpush1.bf16.msra.mxu0 %v1571
    %2120 = vmatprep.subr.bf16.mxu0 %v1578
    %2121 = vmatpush1.bf16.msra.mxu0 %v1577
    %2122 = vmatprep.subr.bf16.mxu0 %v1584
    %2123 = vmatpush1.bf16.msra.mxu0 %v1583
    %2124 = vmatprep.subr.bf16.mxu0 %v1590
    %2125 = vmatpush1.bf16.msra.mxu0 %v1589
    %2126 = vmatprep.subr.bf16.mxu0 %v1596
    %2127 = vmatpush1.bf16.msra.mxu0 %v1595
    %2128 = vmatprep.subr.bf16.mxu0 %v1602
    %2129 = vmatpush1.bf16.msra.mxu0 %v1601
    %2130 = vmatprep.mubr.bf16.mxu0 %v132
    %2131 = vmatmul.mubr.bf16.gmra.mrb[0].mxu0 %v131
    %v2132 = vpop.f32.mrb[0].mxu0
    %v2133 = vadd.f32 %v2092, %v2132
    %v2134 = vpop.f32.mrb[0].mxu0
    %v2135 = vadd.f32 %v2094, %v2134
    %v2136 = vpop.f32.mrb[0].mxu0
    %v2137 = vpop.f32.mrb[0].mxu0
    %2138 = vdwg.mxu0
    %2139 = vmatprep.subr.bf16.mxu0 %v1322
    %2140 = vmatpush1.bf16.msra.mxu0 %v1321
    %2141 = vmatprep.subr.bf16.mxu0 %v1328
    %2142 = vmatpush1.bf16.msra.mxu0 %v1327
    %2143 = vmatprep.subr.bf16.mxu0 %v1334
    %2144 = vmatpush1.bf16.msra.mxu0 %v1333
    %2145 = vmatprep.subr.bf16.mxu0 %v1340
    %2146 = vmatpush1.bf16.msra.mxu0 %v1339
    %2147 = vmatprep.subr.bf16.mxu0 %v1346
    %2148 = vmatpush1.bf16.msra.mxu0 %v1345
    %2149 = vmatprep.subr.bf16.mxu0 %v1352
    %2150 = vmatpush1.bf16.msra.mxu0 %v1351
    %2151 = vmatprep.subr.bf16.mxu0 %v1358
    %2152 = vmatpush1.bf16.msra.mxu0 %v1357
    %2153 = vmatprep.subr.bf16.mxu0 %v1364
    %2154 = vmatpush1.bf16.msra.mxu0 %v1363
    %2155 = vmatprep.subr.bf16.mxu0 %v1370
    %2156 = vmatpush1.bf16.msra.mxu0 %v1369
    %2157 = vmatprep.subr.bf16.mxu0 %v1376
    %2158 = vmatpush1.bf16.msra.mxu0 %v1375
    %2159 = vmatprep.subr.bf16.mxu0 %v1382
    %2160 = vmatpush1.bf16.msra.mxu0 %v1381
    %2161 = vmatprep.subr.bf16.mxu0 %v1388
    %2162 = vmatpush1.bf16.msra.mxu0 %v1387
    %2163 = vmatprep.subr.bf16.mxu0 %v1394
    %2164 = vmatpush1.bf16.msra.mxu0 %v1393
    %2165 = vmatprep.subr.bf16.mxu0 %v1400
    %2166 = vmatpush1.bf16.msra.mxu0 %v1399
    %2167 = vmatprep.subr.bf16.mxu0 %v1406
    %2168 = vmatpush1.bf16.msra.mxu0 %v1405
    %2169 = vmatprep.subr.bf16.mxu0 %v1412
    %2170 = vmatpush1.bf16.msra.mxu0 %v1411
    %2171 = vmatprep.mubr.bf16.mxu0 %v128
    %2172 = vmatmul.mubr.bf16.gmra.mrb[0].mxu0 %v127
    %v2173 = vpop.f32.mrb[0].mxu0
    %v2174 = vadd.f32 %v442, %v2173
    %v2175 = vpop.f32.mrb[0].mxu0
    %v2176 = vadd.f32 %v446, %v2175
    %v2177 = vpop.f32.mrb[0].mxu0
    %v2178 = vpop.f32.mrb[0].mxu0
    %2179 = vdwg.mxu0
    %2180 = vmatprep.subr.bf16.mxu0 %v1418
    %2181 = vmatpush1.bf16.msra.mxu0 %v1417
    %2182 = vmatprep.subr.bf16.mxu0 %v1424
    %2183 = vmatpush1.bf16.msra.mxu0 %v1423
    %2184 = vmatprep.subr.bf16.mxu0 %v1430
    %2185 = vmatpush1.bf16.msra.mxu0 %v1429
    %2186 = vmatprep.subr.bf16.mxu0 %v1436
    %2187 = vmatpush1.bf16.msra.mxu0 %v1435
    %2188 = vmatprep.subr.bf16.mxu0 %v1442
    %2189 = vmatpush1.bf16.msra.mxu0 %v1441
    %2190 = vmatprep.subr.bf16.mxu0 %v1448
    %2191 = vmatpush1.bf16.msra.mxu0 %v1447
    %2192 = vmatprep.subr.bf16.mxu0 %v1454
    %2193 = vmatpush1.bf16.msra.mxu0 %v1453
    %2194 = vmatprep.subr.bf16.mxu0 %v1460
    %2195 = vmatpush1.bf16.msra.mxu0 %v1459
    %2196 = vmatprep.subr.bf16.mxu0 %v1466
    %2197 = vmatpush1.bf16.msra.mxu0 %v1465
    %2198 = vmatprep.subr.bf16.mxu0 %v1472
    %2199 = vmatpush1.bf16.msra.mxu0 %v1471
    %2200 = vmatprep.subr.bf16.mxu0 %v1478
    %2201 = vmatpush1.bf16.msra.mxu0 %v1477
    %2202 = vmatprep.subr.bf16.mxu0 %v1484
    %2203 = vmatpush1.bf16.msra.mxu0 %v1483
    %2204 = vmatprep.subr.bf16.mxu0 %v1490
    %2205 = vmatpush1.bf16.msra.mxu0 %v1489
    %2206 = vmatprep.subr.bf16.mxu0 %v1496
    %2207 = vmatpush1.bf16.msra.mxu0 %v1495
    %2208 = vmatprep.subr.bf16.mxu0 %v1502
    %2209 = vmatpush1.bf16.msra.mxu0 %v1501
    %2210 = vmatprep.subr.bf16.mxu0 %v1508
    %2211 = vmatpush1.bf16.msra.mxu0 %v1507
    %2212 = vmatprep.mubr.bf16.mxu0 %v130
    %2213 = vmatmul.mubr.bf16.gmra.mrb[0].mxu0 %v129
    %v2214 = vpop.f32.mrb[0].mxu0
    %v2215 = vadd.f32 %v2174, %v2214
    %v2216 = vpop.f32.mrb[0].mxu0
    %v2217 = vadd.f32 %v2176, %v2216
    %v2218 = vpop.f32.mrb[0].mxu0
    %v2219 = vpop.f32.mrb[0].mxu0
    %2220 = vdwg.mxu0
    %2221 = vmatprep.subr.bf16.mxu0 %v1514
    %2222 = vmatpush1.bf16.msra.mxu0 %v1513
    %2223 = vmatprep.subr.bf16.mxu0 %v1520
    %2224 = vmatpush1.bf16.msra.mxu0 %v1519
    %2225 = vmatprep.subr.bf16.mxu0 %v1526
    %2226 = vmatpush1.bf16.msra.mxu0 %v1525
    %2227 = vmatprep.subr.bf16.mxu0 %v1532
    %2228 = vmatpush1.bf16.msra.mxu0 %v1531
    %2229 = vmatprep.subr.bf16.mxu0 %v1538
    %2230 = vmatpush1.bf16.msra.mxu0 %v1537
    %2231 = vmatprep.subr.bf16.mxu0 %v1544
    %2232 = vmatpush1.bf16.msra.mxu0 %v1543
    %2233 = vmatprep.subr.bf16.mxu0 %v1550
    %2234 = vmatpush1.bf16.msra.mxu0 %v1549
    %2235 = vmatprep.subr.bf16.mxu0 %v1556
    %2236 = vmatpush1.bf16.msra.mxu0 %v1555
    %2237 = vmatprep.subr.bf16.mxu0 %v1562
    %2238 = vmatpush1.bf16.msra.mxu0 %v1561
    %2239 = vmatprep.subr.bf16.mxu0 %v1568
    %2240 = vmatpush1.bf16.msra.mxu0 %v1567
    %2241 = vmatprep.subr.bf16.mxu0 %v1574
    %2242 = vmatpush1.bf16.msra.mxu0 %v1573
    %2243 = vmatprep.subr.bf16.mxu0 %v1580
    %2244 = vmatpush1.bf16.msra.mxu0 %v1579
    %2245 = vmatprep.subr.bf16.mxu0 %v1586
    %2246 = vmatpush1.bf16.msra.mxu0 %v1585
    %2247 = vmatprep.subr.bf16.mxu0 %v1592
    %2248 = vmatpush1.bf16.msra.mxu0 %v1591
    %2249 = vmatprep.subr.bf16.mxu0 %v1598
    %2250 = vmatpush1.bf16.msra.mxu0 %v1597
    %2251 = vmatprep.subr.bf16.mxu0 %v1604
    %2252 = vmatpush1.bf16.msra.mxu0 %v1603
    %2253 = vmatprep.mubr.bf16.mxu0 %v132
    %2254 = vmatmul.mubr.bf16.gmra.mrb[0].mxu0 %v131
    %v2255 = vpop.f32.mrb[0].mxu0
    %v2256 = vadd.f32 %v2215, %v2255
    %v2257 = vpop.f32.mrb[0].mxu0
    %v2258 = vadd.f32 %v2217, %v2257
    %v2259 = vpop.f32.mrb[0].mxu0
    %v2260 = vpop.f32.mrb[0].mxu0
    %2261 = vdwg.mxu0
    %v2262 = vtanh.pop %v2010
    %v2263 = vtanh.pop %v2012
    %v2264 = vtanh.pop %v2133
    %v2265 = vtanh.pop %v2135
    %v2266 = vtanh.pop %v2256
    %v2267 = vtanh.pop %v2258
    %v2268 = vpack.c.bf16 %v2262, %v2262
    %v2269 = vpack.c.bf16 %v2263, %v2263
    %v2270 = vpack.c.bf16 %v2264, %v2264
    %v2271 = vpack.c.bf16 %v2265, %v2265
    %v2272 = vpack.c.bf16 %v2266, %v2266
    %v2273 = vpack.c.bf16 %v2267, %v2267
    %v2274 = vld [vmem:[#allocation8] sm:$0xff]
    %v2275 = vld [vmem:[#allocation8 + $0x8] sm:$0xff]
    %v2276 = vld [vmem:[#allocation8 + $0x10] sm:$0xff]
    %v2277 = vld [vmem:[#allocation8 + $0x18] sm:$0xff]
    %v2278 = vld [vmem:[#allocation8 + $0x20] sm:$0xff]
    %v2279 = vld [vmem:[#allocation8 + $0x28] sm:$0xff]
    %v2280 = vld [vmem:[#allocation8 + $0x30] sm:$0xff]
    %v2281 = vld [vmem:[#allocation8 + $0x38] sm:$0xff]
    %v2282 = vld [vmem:[#allocation8 + $0x40] sm:$0xff]
    %v2283 = vld [vmem:[#allocation8 + $0x48] sm:$0xff]
    %v2284 = vld [vmem:[#allocation8 + $0x50] sm:$0xff]
    %v2285 = vld [vmem:[#allocation8 + $0x58] sm:$0xff]
    %v2286 = vld [vmem:[#allocation8 + $0x60] sm:$0xff]
    %v2287 = vld [vmem:[#allocation8 + $0x68] sm:$0xff]
    %v2288 = vld [vmem:[#allocation8 + $0x70] sm:$0xff]
    %v2289 = vld [vmem:[#allocation8 + $0x78] sm:$0xff]
    %v2290 = vld [vmem:[#allocation8 + $0x80] sm:$0xff]
    %v2291 = vld [vmem:[#allocation8 + $0x88] sm:$0xff]
    %v2292 = vld [vmem:[#allocation8 + $0x90] sm:$0xff]
    %v2293 = vld [vmem:[#allocation8 + $0x98] sm:$0xff]
    %v2294 = vld [vmem:[#allocation8 + $0xa0] sm:$0xff]
    %v2295 = vld [vmem:[#allocation8 + $0xa8] sm:$0xff]
    %v2296 = vld [vmem:[#allocation8 + $0xb0] sm:$0xff]
    %v2297 = vld [vmem:[#allocation8 + $0xb8] sm:$0xff]
    %v2298 = vld [vmem:[#allocation8 + $0xc0] sm:$0xff]
    %v2299 = vld [vmem:[#allocation8 + $0xc8] sm:$0xff]
    %v2300 = vld [vmem:[#allocation8 + $0xd0] sm:$0xff]
    %v2301 = vld [vmem:[#allocation8 + $0xd8] sm:$0xff]
    %v2302 = vld [vmem:[#allocation8 + $0xe0] sm:$0xff]
    %v2303 = vld [vmem:[#allocation8 + $0xe8] sm:$0xff]
    %v2304 = vld [vmem:[#allocation8 + $0xf0] sm:$0xff]
    %v2305 = vld [vmem:[#allocation8 + $0xf8] sm:$0xff]
    %v2306 = vld [vmem:[#allocation8 + $0x100] sm:$0xff]
    %v2307 = vld [vmem:[#allocation8 + $0x108] sm:$0xff]
    %v2308 = vld [vmem:[#allocation8 + $0x110] sm:$0xff]
    %v2309 = vld [vmem:[#allocation8 + $0x118] sm:$0xff]
    %v2310 = vld [vmem:[#allocation8 + $0x120] sm:$0xff]
    %v2311 = vld [vmem:[#allocation8 + $0x128] sm:$0xff]
    %v2312 = vld [vmem:[#allocation8 + $0x130] sm:$0xff]
    %v2313 = vld [vmem:[#allocation8 + $0x138] sm:$0xff]
    %v2314 = vld [vmem:[#allocation8 + $0x140] sm:$0xff]
    %v2315 = vld [vmem:[#allocation8 + $0x148] sm:$0xff]
    %v2316 = vld [vmem:[#allocation8 + $0x150] sm:$0xff]
    %v2317 = vld [vmem:[#allocation8 + $0x158] sm:$0xff]
    %v2318 = vld [vmem:[#allocation8 + $0x160] sm:$0xff]
    %v2319 = vld [vmem:[#allocation8 + $0x168] sm:$0xff]
    %v2320 = vld [vmem:[#allocation8 + $0x170] sm:$0xff]
    %v2321 = vld [vmem:[#allocation8 + $0x178] sm:$0xff]
    %v2322 = vld [vmem:[#allocation8 + $0x180] sm:$0xff]
    %v2323 = vld [vmem:[#allocation8 + $0x188] sm:$0xff]
    %v2324 = vld [vmem:[#allocation8 + $0x190] sm:$0xff]
    %v2325 = vld [vmem:[#allocation8 + $0x198] sm:$0xff]
    %v2326 = vld [vmem:[#allocation8 + $0x1a0] sm:$0xff]
    %v2327 = vld [vmem:[#allocation8 + $0x1a8] sm:$0xff]
    %v2328 = vld [vmem:[#allocation8 + $0x1b0] sm:$0xff]
    %v2329 = vld [vmem:[#allocation8 + $0x1b8] sm:$0xff]
    %v2330 = vld [vmem:[#allocation8 + $0x1c0] sm:$0xff]
    %v2331 = vld [vmem:[#allocation8 + $0x1c8] sm:$0xff]
    %v2332 = vld [vmem:[#allocation8 + $0x1d0] sm:$0xff]
    %v2333 = vld [vmem:[#allocation8 + $0x1d8] sm:$0xff]
    %v2334 = vld [vmem:[#allocation8 + $0x1e0] sm:$0xff]
    %v2335 = vld [vmem:[#allocation8 + $0x1e8] sm:$0xff]
    %v2336 = vld [vmem:[#allocation8 + $0x1f0] sm:$0xff]
    %v2337 = vld [vmem:[#allocation8 + $0x1f8] sm:$0xff]
    %v2338 = vld [vmem:[#allocation8 + $0x200] sm:$0xff]
    %v2339 = vld [vmem:[#allocation8 + $0x208] sm:$0xff]
    %v2340 = vld [vmem:[#allocation8 + $0x210] sm:$0xff]
    %v2341 = vld [vmem:[#allocation8 + $0x218] sm:$0xff]
    %v2342 = vld [vmem:[#allocation8 + $0x220] sm:$0xff]
    %v2343 = vld [vmem:[#allocation8 + $0x228] sm:$0xff]
    %v2344 = vld [vmem:[#allocation8 + $0x230] sm:$0xff]
    %v2345 = vld [vmem:[#allocation8 + $0x238] sm:$0xff]
    %v2346 = vld [vmem:[#allocation8 + $0x240] sm:$0xff]
    %v2347 = vld [vmem:[#allocation8 + $0x248] sm:$0xff]
    %v2348 = vld [vmem:[#allocation8 + $0x250] sm:$0xff]
    %v2349 = vld [vmem:[#allocation8 + $0x258] sm:$0xff]
    %v2350 = vld [vmem:[#allocation8 + $0x260] sm:$0xff]
    %v2351 = vld [vmem:[#allocation8 + $0x268] sm:$0xff]
    %v2352 = vld [vmem:[#allocation8 + $0x270] sm:$0xff]
    %v2353 = vld [vmem:[#allocation8 + $0x278] sm:$0xff]
    %v2354 = vld [vmem:[#allocation8 + $0x280] sm:$0xff]
    %v2355 = vld [vmem:[#allocation8 + $0x288] sm:$0xff]
    %v2356 = vld [vmem:[#allocation8 + $0x290] sm:$0xff]
    %v2357 = vld [vmem:[#allocation8 + $0x298] sm:$0xff]
    %v2358 = vld [vmem:[#allocation8 + $0x2a0] sm:$0xff]
    %v2359 = vld [vmem:[#allocation8 + $0x2a8] sm:$0xff]
    %v2360 = vld [vmem:[#allocation8 + $0x2b0] sm:$0xff]
    %v2361 = vld [vmem:[#allocation8 + $0x2b8] sm:$0xff]
    %v2362 = vld [vmem:[#allocation8 + $0x2c0] sm:$0xff]
    %v2363 = vld [vmem:[#allocation8 + $0x2c8] sm:$0xff]
    %v2364 = vld [vmem:[#allocation8 + $0x2d0] sm:$0xff]
    %v2365 = vld [vmem:[#allocation8 + $0x2d8] sm:$0xff]
    %v2366 = vld [vmem:[#allocation8 + $0x2e0] sm:$0xff]
    %v2367 = vld [vmem:[#allocation8 + $0x2e8] sm:$0xff]
    %v2368 = vld [vmem:[#allocation8 + $0x2f0] sm:$0xff]
    %v2369 = vld [vmem:[#allocation8 + $0x2f8] sm:$0xff]
    %v2370 = vld [vmem:[#allocation10] sm:$0x3]
    %v2372 = vlaneseq
    %v2373 = vshrl.u32 %v2372, 7
    %v2374 = vsub.s32 0, %v2373
    %v2375 = vrot.slane %v2370, %v2374
    %v2376 = vlaneseq
    %v2377 = vshrl.u32 %v2376, 7
    %v2378 = vsub.s32 1, %v2377
    %v2379 = vrot.slane %v2370, %v2378
    %v2478 = vunpack.c.l.b16 %v2274
    %v2479 = vunpack.c.h.b16 %v2274
    %v2480 = vunpack.c.l.b16 %v2275
    %v2481 = vunpack.c.h.b16 %v2275
    %v2482 = vunpack.c.l.b16 %v2276
    %v2483 = vunpack.c.h.b16 %v2276
    %v2484 = vunpack.c.l.b16 %v2277
    %v2485 = vunpack.c.h.b16 %v2277
    %v2486 = vunpack.c.l.b16 %v2278
    %v2487 = vunpack.c.h.b16 %v2278
    %v2488 = vunpack.c.l.b16 %v2279
    %v2489 = vunpack.c.h.b16 %v2279
    %v2490 = vunpack.c.l.b16 %v2280
    %v2491 = vunpack.c.h.b16 %v2280
    %v2492 = vunpack.c.l.b16 %v2281
    %v2493 = vunpack.c.h.b16 %v2281
    %v2494 = vunpack.c.l.b16 %v2282
    %v2495 = vunpack.c.h.b16 %v2282
    %v2496 = vunpack.c.l.b16 %v2283
    %v2497 = vunpack.c.h.b16 %v2283
    %v2498 = vunpack.c.l.b16 %v2284
    %v2499 = vunpack.c.h.b16 %v2284
    %v2500 = vunpack.c.l.b16 %v2285
    %v2501 = vunpack.c.h.b16 %v2285
    %v2502 = vunpack.c.l.b16 %v2286
    %v2503 = vunpack.c.h.b16 %v2286
    %v2504 = vunpack.c.l.b16 %v2287
    %v2505 = vunpack.c.h.b16 %v2287
    %v2506 = vunpack.c.l.b16 %v2288
    %v2507 = vunpack.c.h.b16 %v2288
    %v2508 = vunpack.c.l.b16 %v2289
    %v2509 = vunpack.c.h.b16 %v2289
    %v2510 = vunpack.c.l.b16 %v2290
    %v2511 = vunpack.c.h.b16 %v2290
    %v2512 = vunpack.c.l.b16 %v2291
    %v2513 = vunpack.c.h.b16 %v2291
    %v2514 = vunpack.c.l.b16 %v2292
    %v2515 = vunpack.c.h.b16 %v2292
    %v2516 = vunpack.c.l.b16 %v2293
    %v2517 = vunpack.c.h.b16 %v2293
    %v2518 = vunpack.c.l.b16 %v2294
    %v2519 = vunpack.c.h.b16 %v2294
    %v2520 = vunpack.c.l.b16 %v2295
    %v2521 = vunpack.c.h.b16 %v2295
    %v2522 = vunpack.c.l.b16 %v2296
    %v2523 = vunpack.c.h.b16 %v2296
    %v2524 = vunpack.c.l.b16 %v2297
    %v2525 = vunpack.c.h.b16 %v2297
    %v2526 = vunpack.c.l.b16 %v2298
    %v2527 = vunpack.c.h.b16 %v2298
    %v2528 = vunpack.c.l.b16 %v2299
    %v2529 = vunpack.c.h.b16 %v2299
    %v2530 = vunpack.c.l.b16 %v2300
    %v2531 = vunpack.c.h.b16 %v2300
    %v2532 = vunpack.c.l.b16 %v2301
    %v2533 = vunpack.c.h.b16 %v2301
    %v2534 = vunpack.c.l.b16 %v2302
    %v2535 = vunpack.c.h.b16 %v2302
    %v2536 = vunpack.c.l.b16 %v2303
    %v2537 = vunpack.c.h.b16 %v2303
    %v2538 = vunpack.c.l.b16 %v2304
    %v2539 = vunpack.c.h.b16 %v2304
    %v2540 = vunpack.c.l.b16 %v2305
    %v2541 = vunpack.c.h.b16 %v2305
    %v2542 = vunpack.c.l.b16 %v2306
    %v2543 = vunpack.c.h.b16 %v2306
    %v2544 = vunpack.c.l.b16 %v2307
    %v2545 = vunpack.c.h.b16 %v2307
    %v2546 = vunpack.c.l.b16 %v2308
    %v2547 = vunpack.c.h.b16 %v2308
    %v2548 = vunpack.c.l.b16 %v2309
    %v2549 = vunpack.c.h.b16 %v2309
    %v2550 = vunpack.c.l.b16 %v2310
    %v2551 = vunpack.c.h.b16 %v2310
    %v2552 = vunpack.c.l.b16 %v2311
    %v2553 = vunpack.c.h.b16 %v2311
    %v2554 = vunpack.c.l.b16 %v2312
    %v2555 = vunpack.c.h.b16 %v2312
    %v2556 = vunpack.c.l.b16 %v2313
    %v2557 = vunpack.c.h.b16 %v2313
    %v2558 = vunpack.c.l.b16 %v2314
    %v2559 = vunpack.c.h.b16 %v2314
    %v2560 = vunpack.c.l.b16 %v2315
    %v2561 = vunpack.c.h.b16 %v2315
    %v2562 = vunpack.c.l.b16 %v2316
    %v2563 = vunpack.c.h.b16 %v2316
    %v2564 = vunpack.c.l.b16 %v2317
    %v2565 = vunpack.c.h.b16 %v2317
    %v2566 = vunpack.c.l.b16 %v2318
    %v2567 = vunpack.c.h.b16 %v2318
    %v2568 = vunpack.c.l.b16 %v2319
    %v2569 = vunpack.c.h.b16 %v2319
    %v2570 = vunpack.c.l.b16 %v2320
    %v2571 = vunpack.c.h.b16 %v2320
    %v2572 = vunpack.c.l.b16 %v2321
    %v2573 = vunpack.c.h.b16 %v2321
    %v2574 = vunpack.c.l.b16 %v2322
    %v2575 = vunpack.c.h.b16 %v2322
    %v2576 = vunpack.c.l.b16 %v2323
    %v2577 = vunpack.c.h.b16 %v2323
    %v2578 = vunpack.c.l.b16 %v2324
    %v2579 = vunpack.c.h.b16 %v2324
    %v2580 = vunpack.c.l.b16 %v2325
    %v2581 = vunpack.c.h.b16 %v2325
    %v2582 = vunpack.c.l.b16 %v2326
    %v2583 = vunpack.c.h.b16 %v2326
    %v2584 = vunpack.c.l.b16 %v2327
    %v2585 = vunpack.c.h.b16 %v2327
    %v2586 = vunpack.c.l.b16 %v2328
    %v2587 = vunpack.c.h.b16 %v2328
    %v2588 = vunpack.c.l.b16 %v2329
    %v2589 = vunpack.c.h.b16 %v2329
    %v2590 = vunpack.c.l.b16 %v2330
    %v2591 = vunpack.c.h.b16 %v2330
    %v2592 = vunpack.c.l.b16 %v2331
    %v2593 = vunpack.c.h.b16 %v2331
    %v2594 = vunpack.c.l.b16 %v2332
    %v2595 = vunpack.c.h.b16 %v2332
    %v2596 = vunpack.c.l.b16 %v2333
    %v2597 = vunpack.c.h.b16 %v2333
    %v2598 = vunpack.c.l.b16 %v2334
    %v2599 = vunpack.c.h.b16 %v2334
    %v2600 = vunpack.c.l.b16 %v2335
    %v2601 = vunpack.c.h.b16 %v2335
    %v2602 = vunpack.c.l.b16 %v2336
    %v2603 = vunpack.c.h.b16 %v2336
    %v2604 = vunpack.c.l.b16 %v2337
    %v2605 = vunpack.c.h.b16 %v2337
    %v2606 = vunpack.c.l.b16 %v2338
    %v2607 = vunpack.c.h.b16 %v2338
    %v2608 = vunpack.c.l.b16 %v2339
    %v2609 = vunpack.c.h.b16 %v2339
    %v2610 = vunpack.c.l.b16 %v2340
    %v2611 = vunpack.c.h.b16 %v2340
    %v2612 = vunpack.c.l.b16 %v2341
    %v2613 = vunpack.c.h.b16 %v2341
    %v2614 = vunpack.c.l.b16 %v2342
    %v2615 = vunpack.c.h.b16 %v2342
    %v2616 = vunpack.c.l.b16 %v2343
    %v2617 = vunpack.c.h.b16 %v2343
    %v2618 = vunpack.c.l.b16 %v2344
    %v2619 = vunpack.c.h.b16 %v2344
    %v2620 = vunpack.c.l.b16 %v2345
    %v2621 = vunpack.c.h.b16 %v2345
    %v2622 = vunpack.c.l.b16 %v2346
    %v2623 = vunpack.c.h.b16 %v2346
    %v2624 = vunpack.c.l.b16 %v2347
    %v2625 = vunpack.c.h.b16 %v2347
    %v2626 = vunpack.c.l.b16 %v2348
    %v2627 = vunpack.c.h.b16 %v2348
    %v2628 = vunpack.c.l.b16 %v2349
    %v2629 = vunpack.c.h.b16 %v2349
    %v2630 = vunpack.c.l.b16 %v2350
    %v2631 = vunpack.c.h.b16 %v2350
    %v2632 = vunpack.c.l.b16 %v2351
    %v2633 = vunpack.c.h.b16 %v2351
    %v2634 = vunpack.c.l.b16 %v2352
    %v2635 = vunpack.c.h.b16 %v2352
    %v2636 = vunpack.c.l.b16 %v2353
    %v2637 = vunpack.c.h.b16 %v2353
    %v2638 = vunpack.c.l.b16 %v2354
    %v2639 = vunpack.c.h.b16 %v2354
    %v2640 = vunpack.c.l.b16 %v2355
    %v2641 = vunpack.c.h.b16 %v2355
    %v2642 = vunpack.c.l.b16 %v2356
    %v2643 = vunpack.c.h.b16 %v2356
    %v2644 = vunpack.c.l.b16 %v2357
    %v2645 = vunpack.c.h.b16 %v2357
    %v2646 = vunpack.c.l.b16 %v2358
    %v2647 = vunpack.c.h.b16 %v2358
    %v2648 = vunpack.c.l.b16 %v2359
    %v2649 = vunpack.c.h.b16 %v2359
    %v2650 = vunpack.c.l.b16 %v2360
    %v2651 = vunpack.c.h.b16 %v2360
    %v2652 = vunpack.c.l.b16 %v2361
    %v2653 = vunpack.c.h.b16 %v2361
    %v2654 = vunpack.c.l.b16 %v2362
    %v2655 = vunpack.c.h.b16 %v2362
    %v2656 = vunpack.c.l.b16 %v2363
    %v2657 = vunpack.c.h.b16 %v2363
    %v2658 = vunpack.c.l.b16 %v2364
    %v2659 = vunpack.c.h.b16 %v2364
    %v2660 = vunpack.c.l.b16 %v2365
    %v2661 = vunpack.c.h.b16 %v2365
    %v2662 = vunpack.c.l.b16 %v2366
    %v2663 = vunpack.c.h.b16 %v2366
    %v2664 = vunpack.c.l.b16 %v2367
    %v2665 = vunpack.c.h.b16 %v2367
    %v2666 = vunpack.c.l.b16 %v2368
    %v2667 = vunpack.c.h.b16 %v2368
    %v2668 = vunpack.c.l.b16 %v2369
    %v2669 = vunpack.c.h.b16 %v2369
    %v2670 = vpack.c.b16 %v2480, %v2478
    %v2671 = vpack.c.b16 %v2481, %v2479
    %v2672 = vpack.c.b16 %v2484, %v2482
    %v2673 = vpack.c.b16 %v2485, %v2483
    %v2674 = vpack.c.b16 %v2488, %v2486
    %v2675 = vpack.c.b16 %v2489, %v2487
    %v2676 = vpack.c.b16 %v2492, %v2490
    %v2677 = vpack.c.b16 %v2493, %v2491
    %v2678 = vpack.c.b16 %v2496, %v2494
    %v2679 = vpack.c.b16 %v2497, %v2495
    %v2680 = vpack.c.b16 %v2500, %v2498
    %v2681 = vpack.c.b16 %v2501, %v2499
    %v2682 = vpack.c.b16 %v2504, %v2502
    %v2683 = vpack.c.b16 %v2505, %v2503
    %v2684 = vpack.c.b16 %v2508, %v2506
    %v2685 = vpack.c.b16 %v2509, %v2507
    %v2686 = vpack.c.b16 %v2512, %v2510
    %v2687 = vpack.c.b16 %v2513, %v2511
    %v2688 = vpack.c.b16 %v2516, %v2514
    %v2689 = vpack.c.b16 %v2517, %v2515
    %v2690 = vpack.c.b16 %v2520, %v2518
    %v2691 = vpack.c.b16 %v2521, %v2519
    %v2692 = vpack.c.b16 %v2524, %v2522
    %v2693 = vpack.c.b16 %v2525, %v2523
    %v2694 = vpack.c.b16 %v2528, %v2526
    %v2695 = vpack.c.b16 %v2529, %v2527
    %v2696 = vpack.c.b16 %v2532, %v2530
    %v2697 = vpack.c.b16 %v2533, %v2531
    %v2698 = vpack.c.b16 %v2536, %v2534
    %v2699 = vpack.c.b16 %v2537, %v2535
    %v2700 = vpack.c.b16 %v2540, %v2538
    %v2701 = vpack.c.b16 %v2541, %v2539
    %v2702 = vpack.c.b16 %v2544, %v2542
    %v2703 = vpack.c.b16 %v2545, %v2543
    %v2704 = vpack.c.b16 %v2548, %v2546
    %v2705 = vpack.c.b16 %v2549, %v2547
    %v2706 = vpack.c.b16 %v2552, %v2550
    %v2707 = vpack.c.b16 %v2553, %v2551
    %v2708 = vpack.c.b16 %v2556, %v2554
    %v2709 = vpack.c.b16 %v2557, %v2555
    %v2710 = vpack.c.b16 %v2560, %v2558
    %v2711 = vpack.c.b16 %v2561, %v2559
    %v2712 = vpack.c.b16 %v2564, %v2562
    %v2713 = vpack.c.b16 %v2565, %v2563
    %v2714 = vpack.c.b16 %v2568, %v2566
    %v2715 = vpack.c.b16 %v2569, %v2567
    %v2716 = vpack.c.b16 %v2572, %v2570
    %v2717 = vpack.c.b16 %v2573, %v2571
    %v2718 = vpack.c.b16 %v2576, %v2574
    %v2719 = vpack.c.b16 %v2577, %v2575
    %v2720 = vpack.c.b16 %v2580, %v2578
    %v2721 = vpack.c.b16 %v2581, %v2579
    %v2722 = vpack.c.b16 %v2584, %v2582
    %v2723 = vpack.c.b16 %v2585, %v2583
    %v2724 = vpack.c.b16 %v2588, %v2586
    %v2725 = vpack.c.b16 %v2589, %v2587
    %v2726 = vpack.c.b16 %v2592, %v2590
    %v2727 = vpack.c.b16 %v2593, %v2591
    %v2728 = vpack.c.b16 %v2596, %v2594
    %v2729 = vpack.c.b16 %v2597, %v2595
    %v2730 = vpack.c.b16 %v2600, %v2598
    %v2731 = vpack.c.b16 %v2601, %v2599
    %v2732 = vpack.c.b16 %v2604, %v2602
    %v2733 = vpack.c.b16 %v2605, %v2603
    %v2734 = vpack.c.b16 %v2608, %v2606
    %v2735 = vpack.c.b16 %v2609, %v2607
    %v2736 = vpack.c.b16 %v2612, %v2610
    %v2737 = vpack.c.b16 %v2613, %v2611
    %v2738 = vpack.c.b16 %v2616, %v2614
    %v2739 = vpack.c.b16 %v2617, %v2615
    %v2740 = vpack.c.b16 %v2620, %v2618
    %v2741 = vpack.c.b16 %v2621, %v2619
    %v2742 = vpack.c.b16 %v2624, %v2622
    %v2743 = vpack.c.b16 %v2625, %v2623
    %v2744 = vpack.c.b16 %v2628, %v2626
    %v2745 = vpack.c.b16 %v2629, %v2627
    %v2746 = vpack.c.b16 %v2632, %v2630
    %v2747 = vpack.c.b16 %v2633, %v2631
    %v2748 = vpack.c.b16 %v2636, %v2634
    %v2749 = vpack.c.b16 %v2637, %v2635
    %v2750 = vpack.c.b16 %v2640, %v2638
    %v2751 = vpack.c.b16 %v2641, %v2639
    %v2752 = vpack.c.b16 %v2644, %v2642
    %v2753 = vpack.c.b16 %v2645, %v2643
    %v2754 = vpack.c.b16 %v2648, %v2646
    %v2755 = vpack.c.b16 %v2649, %v2647
    %v2756 = vpack.c.b16 %v2652, %v2650
    %v2757 = vpack.c.b16 %v2653, %v2651
    %v2758 = vpack.c.b16 %v2656, %v2654
    %v2759 = vpack.c.b16 %v2657, %v2655
    %v2760 = vpack.c.b16 %v2660, %v2658
    %v2761 = vpack.c.b16 %v2661, %v2659
    %v2762 = vpack.c.b16 %v2664, %v2662
    %v2763 = vpack.c.b16 %v2665, %v2663
    %v2764 = vpack.c.b16 %v2668, %v2666
    %v2765 = vpack.c.b16 %v2669, %v2667
    %2862 = vmatprep.subr.bf16.mxu0 %v2671
    %2863 = vmatpush1.bf16.msra.mxu0 %v2670
    %2864 = vmatprep.subr.bf16.mxu0 %v2673
    %2865 = vmatpush1.bf16.msra.mxu0 %v2672
    %2866 = vmatprep.subr.bf16.mxu0 %v2675
    %2867 = vmatpush1.bf16.msra.mxu0 %v2674
    %2868 = vmatprep.subr.bf16.mxu0 %v2677
    %2869 = vmatpush1.bf16.msra.mxu0 %v2676
    %2870 = vmatprep.subr.bf16.mxu0 %v2679
    %2871 = vmatpush1.bf16.msra.mxu0 %v2678
    %2872 = vmatprep.subr.bf16.mxu0 %v2681
    %2873 = vmatpush1.bf16.msra.mxu0 %v2680
    %2874 = vmatprep.subr.bf16.mxu0 %v2683
    %2875 = vmatpush1.bf16.msra.mxu0 %v2682
    %2876 = vmatprep.subr.bf16.mxu0 %v2685
    %2877 = vmatpush1.bf16.msra.mxu0 %v2684
    %2878 = vmatprep.subr.bf16.mxu0 %v2687
    %2879 = vmatpush1.bf16.msra.mxu0 %v2686
    %2880 = vmatprep.subr.bf16.mxu0 %v2689
    %2881 = vmatpush1.bf16.msra.mxu0 %v2688
    %2882 = vmatprep.subr.bf16.mxu0 %v2691
    %2883 = vmatpush1.bf16.msra.mxu0 %v2690
    %2884 = vmatprep.subr.bf16.mxu0 %v2693
    %2885 = vmatpush1.bf16.msra.mxu0 %v2692
    %2886 = vmatprep.subr.bf16.mxu0 %v2695
    %2887 = vmatpush1.bf16.msra.mxu0 %v2694
    %2888 = vmatprep.subr.bf16.mxu0 %v2697
    %2889 = vmatpush1.bf16.msra.mxu0 %v2696
    %2890 = vmatprep.subr.bf16.mxu0 %v2699
    %2891 = vmatpush1.bf16.msra.mxu0 %v2698
    %2892 = vmatprep.subr.bf16.mxu0 %v2701
    %2893 = vmatpush1.bf16.msra.mxu0 %v2700
    %2894 = vmatprep.mubr.bf16.mxu0 %v2269
    %2895 = vmatmul.mubr.bf16.gmra.mrb[0].mxu0 %v2268
    %v2896 = vpop.f32.mrb[0].mxu0
    %v2897 = vadd.f32 %v2375, %v2896
    %v2898 = vpop.f32.mrb[0].mxu0
    %v2899 = vadd.f32 %v2379, %v2898
    %v2900 = vpop.f32.mrb[0].mxu0
    %v2901 = vpop.f32.mrb[0].mxu0
    %2902 = vdwg.mxu0
    %2903 = vmatprep.subr.bf16.mxu0 %v2703
    %2904 = vmatpush1.bf16.msra.mxu0 %v2702
    %2905 = vmatprep.subr.bf16.mxu0 %v2705
    %2906 = vmatpush1.bf16.msra.mxu0 %v2704
    %2907 = vmatprep.subr.bf16.mxu0 %v2707
    %2908 = vmatpush1.bf16.msra.mxu0 %v2706
    %2909 = vmatprep.subr.bf16.mxu0 %v2709
    %2910 = vmatpush1.bf16.msra.mxu0 %v2708
    %2911 = vmatprep.subr.bf16.mxu0 %v2711
    %2912 = vmatpush1.bf16.msra.mxu0 %v2710
    %2913 = vmatprep.subr.bf16.mxu0 %v2713
    %2914 = vmatpush1.bf16.msra.mxu0 %v2712
    %2915 = vmatprep.subr.bf16.mxu0 %v2715
    %2916 = vmatpush1.bf16.msra.mxu0 %v2714
    %2917 = vmatprep.subr.bf16.mxu0 %v2717
    %2918 = vmatpush1.bf16.msra.mxu0 %v2716
    %2919 = vmatprep.subr.bf16.mxu0 %v2719
    %2920 = vmatpush1.bf16.msra.mxu0 %v2718
    %2921 = vmatprep.subr.bf16.mxu0 %v2721
    %2922 = vmatpush1.bf16.msra.mxu0 %v2720
    %2923 = vmatprep.subr.bf16.mxu0 %v2723
    %2924 = vmatpush1.bf16.msra.mxu0 %v2722
    %2925 = vmatprep.subr.bf16.mxu0 %v2725
    %2926 = vmatpush1.bf16.msra.mxu0 %v2724
    %2927 = vmatprep.subr.bf16.mxu0 %v2727
    %2928 = vmatpush1.bf16.msra.mxu0 %v2726
    %2929 = vmatprep.subr.bf16.mxu0 %v2729
    %2930 = vmatpush1.bf16.msra.mxu0 %v2728
    %2931 = vmatprep.subr.bf16.mxu0 %v2731
    %2932 = vmatpush1.bf16.msra.mxu0 %v2730
    %2933 = vmatprep.subr.bf16.mxu0 %v2733
    %2934 = vmatpush1.bf16.msra.mxu0 %v2732
    %2935 = vmatprep.mubr.bf16.mxu0 %v2271
    %2936 = vmatmul.mubr.bf16.gmra.mrb[0].mxu0 %v2270
    %v2937 = vpop.f32.mrb[0].mxu0
    %v2938 = vadd.f32 %v2897, %v2937
    %v2939 = vpop.f32.mrb[0].mxu0
    %v2940 = vadd.f32 %v2899, %v2939
    %v2941 = vpop.f32.mrb[0].mxu0
    %v2942 = vpop.f32.mrb[0].mxu0
    %2943 = vdwg.mxu0
    %2944 = vmatprep.subr.bf16.mxu0 %v2735
    %2945 = vmatpush1.bf16.msra.mxu0 %v2734
    %2946 = vmatprep.subr.bf16.mxu0 %v2737
    %2947 = vmatpush1.bf16.msra.mxu0 %v2736
    %2948 = vmatprep.subr.bf16.mxu0 %v2739
    %2949 = vmatpush1.bf16.msra.mxu0 %v2738
    %2950 = vmatprep.subr.bf16.mxu0 %v2741
    %2951 = vmatpush1.bf16.msra.mxu0 %v2740
    %2952 = vmatprep.subr.bf16.mxu0 %v2743
    %2953 = vmatpush1.bf16.msra.mxu0 %v2742
    %2954 = vmatprep.subr.bf16.mxu0 %v2745
    %2955 = vmatpush1.bf16.msra.mxu0 %v2744
    %2956 = vmatprep.subr.bf16.mxu0 %v2747
    %2957 = vmatpush1.bf16.msra.mxu0 %v2746
    %2958 = vmatprep.subr.bf16.mxu0 %v2749
    %2959 = vmatpush1.bf16.msra.mxu0 %v2748
    %2960 = vmatprep.subr.bf16.mxu0 %v2751
    %2961 = vmatpush1.bf16.msra.mxu0 %v2750
    %2962 = vmatprep.subr.bf16.mxu0 %v2753
    %2963 = vmatpush1.bf16.msra.mxu0 %v2752
    %2964 = vmatprep.subr.bf16.mxu0 %v2755
    %2965 = vmatpush1.bf16.msra.mxu0 %v2754
    %2966 = vmatprep.subr.bf16.mxu0 %v2757
    %2967 = vmatpush1.bf16.msra.mxu0 %v2756
    %2968 = vmatprep.subr.bf16.mxu0 %v2759
    %2969 = vmatpush1.bf16.msra.mxu0 %v2758
    %2970 = vmatprep.subr.bf16.mxu0 %v2761
    %2971 = vmatpush1.bf16.msra.mxu0 %v2760
    %2972 = vmatprep.subr.bf16.mxu0 %v2763
    %2973 = vmatpush1.bf16.msra.mxu0 %v2762
    %2974 = vmatprep.subr.bf16.mxu0 %v2765
    %2975 = vmatpush1.bf16.msra.mxu0 %v2764
    %2976 = vmatprep.mubr.bf16.mxu0 %v2273
    %2977 = vmatmul.mubr.bf16.gmra.mrb[0].mxu0 %v2272
    %v2978 = vpop.f32.mrb[0].mxu0
    %v2979 = vadd.f32 %v2938, %v2978
    %v2980 = vpop.f32.mrb[0].mxu0
    %v2981 = vadd.f32 %v2940, %v2980
    %v2982 = vpop.f32.mrb[0].mxu0
    %v2983 = vpop.f32.mrb[0].mxu0
    %2984 = vdwg.mxu0
    %v2985 = vmax.f32 %v2979, 0.0
    %v2986 = vmax.f32 %v2981, 0.0
    %v2987 = vpack.c.bf16 %v2985, %v2985
    %v2988 = vpack.c.bf16 %v2986, %v2986
    %v2989 = vld [vmem:[#allocation11] sm:$0xf]
    %v2990 = vld [vmem:[#allocation11 + $0x4] sm:$0xf]
    %v2991 = vld [vmem:[#allocation11 + $0x8] sm:$0xf]
    %v2992 = vld [vmem:[#allocation11 + $0xc] sm:$0xf]
    %v2993 = vld [vmem:[#allocation11 + $0x10] sm:$0xf]
    %v2994 = vld [vmem:[#allocation11 + $0x14] sm:$0xf]
    %v2995 = vld [vmem:[#allocation11 + $0x18] sm:$0xf]
    %v2996 = vld [vmem:[#allocation11 + $0x1c] sm:$0xf]
    %v2997 = vld [vmem:[#allocation11 + $0x20] sm:$0xf]
    %v2998 = vld [vmem:[#allocation11 + $0x24] sm:$0xf]
    %v2999 = vld [vmem:[#allocation11 + $0x28] sm:$0xf]
    %v3000 = vld [vmem:[#allocation11 + $0x2c] sm:$0xf]
    %v3001 = vld [vmem:[#allocation11 + $0x30] sm:$0xf]
    %v3002 = vld [vmem:[#allocation11 + $0x34] sm:$0xf]
    %v3003 = vld [vmem:[#allocation11 + $0x38] sm:$0xf]
    %v3004 = vld [vmem:[#allocation11 + $0x3c] sm:$0xf]
    %v3005 = vld [vmem:[#allocation11 + $0x40] sm:$0xf]
    %v3006 = vld [vmem:[#allocation11 + $0x44] sm:$0xf]
    %v3007 = vld [vmem:[#allocation11 + $0x48] sm:$0xf]
    %v3008 = vld [vmem:[#allocation11 + $0x4c] sm:$0xf]
    %v3009 = vld [vmem:[#allocation11 + $0x50] sm:$0xf]
    %v3010 = vld [vmem:[#allocation11 + $0x54] sm:$0xf]
    %v3011 = vld [vmem:[#allocation11 + $0x58] sm:$0xf]
    %v3012 = vld [vmem:[#allocation11 + $0x5c] sm:$0xf]
    %v3013 = vld [vmem:[#allocation11 + $0x60] sm:$0xf]
    %v3014 = vld [vmem:[#allocation11 + $0x64] sm:$0xf]
    %v3015 = vld [vmem:[#allocation11 + $0x68] sm:$0xf]
    %v3016 = vld [vmem:[#allocation11 + $0x6c] sm:$0xf]
    %v3017 = vld [vmem:[#allocation11 + $0x70] sm:$0xf]
    %v3018 = vld [vmem:[#allocation11 + $0x74] sm:$0xf]
    %v3019 = vld [vmem:[#allocation11 + $0x78] sm:$0xf]
    %v3020 = vld [vmem:[#allocation11 + $0x7c] sm:$0xf]
    %v3021 = vld [vmem:[#allocation13] sm:$0x1]
    %v3023 = vlaneseq
    %v3024 = vshrl.u32 %v3023, 7
    %v3025 = vsub.s32 0, %v3024
    %v3026 = vrot.slane %v3021, %v3025
    %v3060 = vunpack.c.l.b16 %v2989
    %v3061 = vunpack.c.l.b16 %v2990
    %v3062 = vunpack.c.l.b16 %v2991
    %v3063 = vunpack.c.l.b16 %v2992
    %v3064 = vunpack.c.l.b16 %v2993
    %v3065 = vunpack.c.l.b16 %v2994
    %v3066 = vunpack.c.l.b16 %v2995
    %v3067 = vunpack.c.l.b16 %v2996
    %v3068 = vunpack.c.l.b16 %v2997
    %v3069 = vunpack.c.l.b16 %v2998
    %v3070 = vunpack.c.l.b16 %v2999
    %v3071 = vunpack.c.l.b16 %v3000
    %v3072 = vunpack.c.l.b16 %v3001
    %v3073 = vunpack.c.l.b16 %v3002
    %v3074 = vunpack.c.l.b16 %v3003
    %v3075 = vunpack.c.l.b16 %v3004
    %v3076 = vunpack.c.l.b16 %v3005
    %v3077 = vunpack.c.l.b16 %v3006
    %v3078 = vunpack.c.l.b16 %v3007
    %v3079 = vunpack.c.l.b16 %v3008
    %v3080 = vunpack.c.l.b16 %v3009
    %v3081 = vunpack.c.l.b16 %v3010
    %v3082 = vunpack.c.l.b16 %v3011
    %v3083 = vunpack.c.l.b16 %v3012
    %v3084 = vunpack.c.l.b16 %v3013
    %v3085 = vunpack.c.l.b16 %v3014
    %v3086 = vunpack.c.l.b16 %v3015
    %v3087 = vunpack.c.l.b16 %v3016
    %v3088 = vunpack.c.l.b16 %v3017
    %v3089 = vunpack.c.l.b16 %v3018
    %v3090 = vunpack.c.l.b16 %v3019
    %v3091 = vunpack.c.l.b16 %v3020
    %v3092 = vpack.c.b16 %v3061, %v3060
    %v3093 = vpack.c.b16 %v3063, %v3062
    %v3094 = vpack.c.b16 %v3065, %v3064
    %v3095 = vpack.c.b16 %v3067, %v3066
    %v3096 = vpack.c.b16 %v3069, %v3068
    %v3097 = vpack.c.b16 %v3071, %v3070
    %v3098 = vpack.c.b16 %v3073, %v3072
    %v3099 = vpack.c.b16 %v3075, %v3074
    %v3100 = vpack.c.b16 %v3077, %v3076
    %v3101 = vpack.c.b16 %v3079, %v3078
    %v3102 = vpack.c.b16 %v3081, %v3080
    %v3103 = vpack.c.b16 %v3083, %v3082
    %v3104 = vpack.c.b16 %v3085, %v3084
    %v3105 = vpack.c.b16 %v3087, %v3086
    %v3106 = vpack.c.b16 %v3089, %v3088
    %v3107 = vpack.c.b16 %v3091, %v3090
    %3124 = vmatprep.subr.bf16.mxu0 0
    %3125 = vmatpush1.bf16.msra.mxu0 %v3092
    %3126 = vmatprep.subr.bf16.mxu0 0
    %3127 = vmatpush1.bf16.msra.mxu0 %v3093
    %3128 = vmatprep.subr.bf16.mxu0 0
    %3129 = vmatpush1.bf16.msra.mxu0 %v3094
    %3130 = vmatprep.subr.bf16.mxu0 0
    %3131 = vmatpush1.bf16.msra.mxu0 %v3095
    %3132 = vmatprep.subr.bf16.mxu0 0
    %3133 = vmatpush1.bf16.msra.mxu0 %v3096
    %3134 = vmatprep.subr.bf16.mxu0 0
    %3135 = vmatpush1.bf16.msra.mxu0 %v3097
    %3136 = vmatprep.subr.bf16.mxu0 0
    %3137 = vmatpush1.bf16.msra.mxu0 %v3098
    %3138 = vmatprep.subr.bf16.mxu0 0
    %3139 = vmatpush1.bf16.msra.mxu0 %v3099
    %3140 = vmatprep.subr.bf16.mxu0 0
    %3141 = vmatpush1.bf16.msra.mxu0 %v3100
    %3142 = vmatprep.subr.bf16.mxu0 0
    %3143 = vmatpush1.bf16.msra.mxu0 %v3101
    %3144 = vmatprep.subr.bf16.mxu0 0
    %3145 = vmatpush1.bf16.msra.mxu0 %v3102
    %3146 = vmatprep.subr.bf16.mxu0 0
    %3147 = vmatpush1.bf16.msra.mxu0 %v3103
    %3148 = vmatprep.subr.bf16.mxu0 0
    %3149 = vmatpush1.bf16.msra.mxu0 %v3104
    %3150 = vmatprep.subr.bf16.mxu0 0
    %3151 = vmatpush1.bf16.msra.mxu0 %v3105
    %3152 = vmatprep.subr.bf16.mxu0 0
    %3153 = vmatpush1.bf16.msra.mxu0 %v3106
    %3154 = vmatprep.subr.bf16.mxu0 0
    %3155 = vmatpush1.bf16.msra.mxu0 %v3107
    %3156 = vmatprep.mubr.bf16.mxu0 %v2988
    %3157 = vmatmul.mubr.bf16.gmra.mrb[0].mxu0 %v2987
    %v3158 = vpop.f32.mrb[0].mxu0
    %v3159 = vadd.f32 %v3026, %v3158
    %v3160 = vpop.f32.mrb[0].mxu0
    %v3161 = vpop.f32.mrb[0].mxu0
    %v3162 = vpop.f32.mrb[0].mxu0
    %3163 = vdwg.mxu0
    %vm3164 = vcmask 1043456
    %v3165 = vsel %vm3164, %v3159, -inf
    %3166 = vmax.xlane.f32.xlu0 %v3165
    %v3167 = vpop.xlane.xlu0 %3166
    %v3168 = vsub.f32 %v3159, %v3167
    %v3169 = vmul.f32 %v3168, 1.442695
    %v3170 = vpow.pop %v3169
    %v3171 = vsel %vm3164, %v3170, 0.0
    %3172 = vadd.xlane.f32.xlu0 %v3171
    %v3173 = vpop.xlane.xlu0 %3172
    %v3174 = vrcp.pop %v3173
    %v3175 = vmul.f32 %v3170, %v3174
    %3176 = vst [vmem:[#allocation14] sm:$0xf] %v3175
    // Predicated region
    $region58: #{tpu_custom_call.1} parent=1 // pred_check
      _
    $region59: #{tpu_custom_call.1} parent=1 // pred_check_branch
      %3178 = sbr.rel (0) target = $region61
    $region60: #{tpu_custom_call.1} parent=1 // pred_region
      %s3180 = ssub.s32 64, 64
      %3181 = vsyncadd [#allocation4], %s3180
      %s3183 = sshll.u32 [#allocation14], 4
      %s3184 = int_to_ptr.vmem [resolvable:$true] %s3183
      %3186 = dma.vmem_to_hbm [thread:$0]  %s3184, 64, %s7, [#allocation4]
    $region61: #{tpu_custom_call.1} parent=1 // pred_fallthru
      _
    // Predicated region
    $region62: #{tpu_custom_call.1} parent=1 // pred_check
      _
    $region63: #{tpu_custom_call.1} parent=1 // pred_check_branch
      %3188 = sbr.rel (0) target = $region65
    $region64: #{tpu_custom_call.1} parent=1 // pred_region
      %3189 = dma.done [#allocation4], 64
    $region65: #{tpu_custom_call.1} parent=1 // pred_fallthru
      _
    %3190 = vsyncpa [#allocation3], 1
    %3191 = vsyncpa [#allocation6], 1
    %3192 = vsyncpa [#allocation9], 1
    %3193 = vsyncpa [#allocation12], 1
    %3194 = vsyncpa [#allocation4], 1

</llo_original>
